<compile_context>
chip_gen: v5e
topology: v5e:2x2
jax: 0.10.0
libtpu: 0.0.40
codegen_flags: <defaults>
</compile_context>

<pallas_src>
import functools
import math

import jax
import jax.numpy as jnp
from jax import lax
from jax.experimental import pallas as pl
from jax.experimental.pallas import tpu as pltpu


def _layernorm(v, gamma, beta, eps=1e-5):
    mean = jnp.mean(v, axis=-1, keepdims=True)
    centered = v - mean
    var = jnp.mean(centered * centered, axis=-1, keepdims=True)
    return centered * lax.rsqrt(var + eps) * gamma + beta


def _encoder_layer_kernel(
    x_ref,
    wq_ref, bq_ref, wk_ref, bk_ref, wv_ref, bv_ref, wo_ref, bo_ref,
    g1_ref, b1_ref,
    w1_ref, c1_ref, w2_ref, c2_ref,
    g2_ref, b2_ref,
    o_ref,
    *, n_heads, d_head,
):
    x = x_ref[0]  # (S, D) f32 tile for this batch element

    # ---- multi-head self-attention: QKV projections on the MXU ----
    q = jnp.dot(x, wq_ref[...], preferred_element_type=jnp.float32) + bq_ref[...]
    k = jnp.dot(x, wk_ref[...], preferred_element_type=jnp.float32) + bk_ref[...]
    v = jnp.dot(x, wv_ref[...], preferred_element_type=jnp.float32) + bv_ref[...]

    scale = 1.0 / math.sqrt(d_head)
    proj = jnp.zeros(x.shape, jnp.float32)
    for h in range(n_heads):                       # static, unrolled head loop
        lo = h * d_head
        qh = q[:, lo:lo + d_head]                  # (S, dh) static lane slices
        kh = k[:, lo:lo + d_head]
        vh = v[:, lo:lo + d_head]
        s = jnp.einsum("qd,kd->qk", qh, kh,
                       preferred_element_type=jnp.float32) * scale   # (S, S)
        s = s - jnp.max(s, axis=-1, keepdims=True)                   # stable softmax
        p = jnp.exp(s)
        p = p / jnp.sum(p, axis=-1, keepdims=True)
        oh = jnp.dot(p, vh, preferred_element_type=jnp.float32)      # (S, dh)
        # concat(heads) @ Wo  ==  sum_h  O_h @ Wo[h*dh:(h+1)*dh, :]
        proj = proj + jnp.dot(oh, wo_ref[lo:lo + d_head, :],
                              preferred_element_type=jnp.float32)
    att = proj + bo_ref[...]

    # ---- residual + LayerNorm 1 ----
    y = _layernorm(x + att, g1_ref[...], b1_ref[...])

    # ---- feed forward: Linear -> ReLU -> Linear ----
    # TODO(synk): component.FeedForward internals are not shown; ReLU assumed.
    hdn = jnp.dot(y, w1_ref[...], preferred_element_type=jnp.float32) + c1_ref[...]
    hdn = jnp.maximum(hdn, 0.0)
    ff = jnp.dot(hdn, w2_ref[...], preferred_element_type=jnp.float32) + c2_ref[...]

    # ---- residual + LayerNorm 2 ----
    o_ref[0] = _layernorm(y + ff, g2_ref[...], b2_ref[...])


_WEIGHT_ORDER = ("wq", "bq", "wk", "bk", "wv", "bv", "wo", "bo",
                 "g1", "b1", "w1", "c1", "w2", "c2", "g2", "b2")


def encoder_layer_forward(x, params, *, n_heads):
    """EncoderLayer.forward: x (B, S, d_model) -> (B, S, d_model)."""
    B, S, D = x.shape
    d_head = D // n_heads
    assert D % n_heads == 0

    def _const_spec(shape):
        # Full-array block, same block for every grid step (weights stay in VMEM).
        return pl.BlockSpec(shape, lambda b, _n=len(shape): (0,) * _n)

    in_specs = [pl.BlockSpec((1, S, D), lambda b: (b, 0, 0))]
    in_specs += [_const_spec(params[name].shape) for name in _WEIGHT_ORDER]

    kernel = functools.partial(_encoder_layer_kernel,
                               n_heads=n_heads, d_head=d_head)

    return pl.pallas_call(
        kernel,
        out_shape=jax.ShapeDtypeStruct((B, S, D), jnp.float32),
        grid_spec=pltpu.PrefetchScalarGridSpec(
            num_scalar_prefetch=0,
            grid=(B,),
            in_specs=in_specs,
            out_specs=pl.BlockSpec((1, S, D), lambda b: (b, 0, 0)),
        ),
        compiler_params=pltpu.CompilerParams(
            dimension_semantics=("parallel",),
        ),
    )(x, *[params[name] for name in _WEIGHT_ORDER])


def encoder_layer_ref(x, params, *, n_heads):
    """Pure-JAX reference of the same EncoderLayer forward (for testing)."""
    B, S, D = x.shape
    d_head = D // n_heads

    def ln(v, g, b, eps=1e-5):
        m = jnp.mean(v, axis=-1, keepdims=True)
        var = jnp.mean((v - m) ** 2, axis=-1, keepdims=True)
        return (v - m) / jnp.sqrt(var + eps) * g + b

    q = x @ params["wq"] + params["bq"]
    k = x @ params["wk"] + params["bk"]
    v = x @ params["wv"] + params["bv"]

    def split(t):
        return t.reshape(B, S, n_heads, d_head).transpose(0, 2, 1, 3)

    qh, kh, vh = split(q), split(k), split(v)
    s = jnp.einsum("bhqd,bhkd->bhqk", qh, kh) / math.sqrt(d_head)
    p = jax.nn.softmax(s, axis=-1)
    o = jnp.einsum("bhqk,bhkd->bhqd", p, vh).transpose(0, 2, 1, 3).reshape(B, S, D)
    att = o @ params["wo"] + params["bo"]
    y = ln(x + att, params["g1"], params["b1"])
    hdn = jnp.maximum(y @ params["w1"] + params["c1"], 0.0)
    ff = hdn @ params["w2"] + params["c2"]
    return ln(y + ff, params["g2"], params["b2"])


if __name__ == "__main__":
    B, S, D_MODEL, N_HEADS, D_FF = 2, 16, 128, 4, 256

    key = jax.random.PRNGKey(0)
    ks = jax.random.split(key, 16)

    def w(k, shape, fan_in):
        return jax.random.normal(k, shape, jnp.float32) / math.sqrt(fan_in)

    params = {
        "wq": w(ks[0], (D_MODEL, D_MODEL), D_MODEL),
        "bq": 0.1 * jax.random.normal(ks[1], (1, D_MODEL), jnp.float32),
        "wk": w(ks[2], (D_MODEL, D_MODEL), D_MODEL),
        "bk": 0.1 * jax.random.normal(ks[3], (1, D_MODEL), jnp.float32),
        "wv": w(ks[4], (D_MODEL, D_MODEL), D_MODEL),
        "bv": 0.1 * jax.random.normal(ks[5], (1, D_MODEL), jnp.float32),
        "wo": w(ks[6], (D_MODEL, D_MODEL), D_MODEL),
        "bo": 0.1 * jax.random.normal(ks[7], (1, D_MODEL), jnp.float32),
        "g1": 1.0 + 0.1 * jax.random.normal(ks[8], (1, D_MODEL), jnp.float32),
        "b1": 0.1 * jax.random.normal(ks[9], (1, D_MODEL), jnp.float32),
        "w1": w(ks[10], (D_MODEL, D_FF), D_MODEL),
        "c1": 0.1 * jax.random.normal(ks[11], (1, D_FF), jnp.float32),
        "w2": w(ks[12], (D_FF, D_MODEL), D_FF),
        "c2": 0.1 * jax.random.normal(ks[13], (1, D_MODEL), jnp.float32),
        "g2": 1.0 + 0.1 * jax.random.normal(ks[14], (1, D_MODEL), jnp.float32),
        "b2": 0.1 * jax.random.normal(ks[15], (1, D_MODEL), jnp.float32),
    }
    x = jax.random.normal(jax.random.PRNGKey(42), (B, S, D_MODEL), jnp.float32)

    out = encoder_layer_forward(x, params, n_heads=N_HEADS)
    jax.block_until_ready(out)

    # Correctness check lives in the test harness, not in the forward path.
    ref = encoder_layer_ref(x, params, n_heads=N_HEADS)
    assert out.shape == (B, S, D_MODEL)
    assert bool(jnp.allclose(out, ref, atol=2e-2, rtol=2e-2)), (
        "max abs err = %f" % float(jnp.max(jnp.abs(out - ref))))

    print("KERNEL_OK")
</pallas_src>

<mosaic_0001>
module attributes {stable_mosaic.version = 11 : i64} {
  func.func @_encoder_layer_kernel(%arg0: i32, %arg1: memref<1x16x128xf32, #tpu.memory_space<vmem>>, %arg2: memref<128x128xf32, #tpu.memory_space<vmem>>, %arg3: memref<1x128xf32, #tpu.memory_space<vmem>>, %arg4: memref<128x128xf32, #tpu.memory_space<vmem>>, %arg5: memref<1x128xf32, #tpu.memory_space<vmem>>, %arg6: memref<128x128xf32, #tpu.memory_space<vmem>>, %arg7: memref<1x128xf32, #tpu.memory_space<vmem>>, %arg8: memref<128x128xf32, #tpu.memory_space<vmem>>, %arg9: memref<1x128xf32, #tpu.memory_space<vmem>>, %arg10: memref<1x128xf32, #tpu.memory_space<vmem>>, %arg11: memref<1x128xf32, #tpu.memory_space<vmem>>, %arg12: memref<128x256xf32, #tpu.memory_space<vmem>>, %arg13: memref<1x256xf32, #tpu.memory_space<vmem>>, %arg14: memref<256x128xf32, #tpu.memory_space<vmem>>, %arg15: memref<1x128xf32, #tpu.memory_space<vmem>>, %arg16: memref<1x128xf32, #tpu.memory_space<vmem>>, %arg17: memref<1x128xf32, #tpu.memory_space<vmem>>, %arg18: memref<1x16x128xf32, #tpu.memory_space<vmem>>) attributes {dimension_semantics = [#tpu.dimension_semantics<parallel>], iteration_bounds = array<i64: 2>, scalar_prefetch = 0 : i64, scratch_operands = 0 : i64, tpu.core_type = #tpu.core_type<tc>, window_params = [{transform_indices = @transform_0, window_bounds = array<i64: 1, 16, 128>}, {pipeline_mode = #tpu.pipeline_mode<synchronous>, transform_indices = @transform_1, window_bounds = array<i64: 128, 128>}, {pipeline_mode = #tpu.pipeline_mode<synchronous>, transform_indices = @transform_2, window_bounds = array<i64: 1, 128>}, {pipeline_mode = #tpu.pipeline_mode<synchronous>, transform_indices = @transform_3, window_bounds = array<i64: 128, 128>}, {pipeline_mode = #tpu.pipeline_mode<synchronous>, transform_indices = @transform_4, window_bounds = array<i64: 1, 128>}, {pipeline_mode = #tpu.pipeline_mode<synchronous>, transform_indices = @transform_5, window_bounds = array<i64: 128, 128>}, {pipeline_mode = #tpu.pipeline_mode<synchronous>, transform_indices = @transform_6, window_bounds = array<i64: 1, 128>}, {pipeline_mode = #tpu.pipeline_mode<synchronous>, transform_indices = @transform_7, window_bounds = array<i64: 128, 128>}, {pipeline_mode = #tpu.pipeline_mode<synchronous>, transform_indices = @transform_8, window_bounds = array<i64: 1, 128>}, {pipeline_mode = #tpu.pipeline_mode<synchronous>, transform_indices = @transform_9, window_bounds = array<i64: 1, 128>}, {pipeline_mode = #tpu.pipeline_mode<synchronous>, transform_indices = @transform_10, window_bounds = array<i64: 1, 128>}, {pipeline_mode = #tpu.pipeline_mode<synchronous>, transform_indices = @transform_11, window_bounds = array<i64: 128, 256>}, {pipeline_mode = #tpu.pipeline_mode<synchronous>, transform_indices = @transform_12, window_bounds = array<i64: 1, 256>}, {pipeline_mode = #tpu.pipeline_mode<synchronous>, transform_indices = @transform_13, window_bounds = array<i64: 256, 128>}, {pipeline_mode = #tpu.pipeline_mode<synchronous>, transform_indices = @transform_14, window_bounds = array<i64: 1, 128>}, {pipeline_mode = #tpu.pipeline_mode<synchronous>, transform_indices = @transform_15, window_bounds = array<i64: 1, 128>}, {pipeline_mode = #tpu.pipeline_mode<synchronous>, transform_indices = @transform_16, window_bounds = array<i64: 1, 128>}, {transform_indices = @transform_17, window_bounds = array<i64: 1, 16, 128>}]} {
    %c0 = arith.constant 0 : index
    %c0_0 = arith.constant 0 : index
    %c0_1 = arith.constant 0 : index
    %0 = vector.load %arg1[%c0, %c0_0, %c0_1] : memref<1x16x128xf32, #tpu.memory_space<vmem>>, vector<1x16x128xf32>
    %1 = vector.shape_cast %0 : vector<1x16x128xf32> to vector<16x128xf32>
    %c0_2 = arith.constant 0 : index
    %c0_3 = arith.constant 0 : index
    %2 = vector.load %arg2[%c0_2, %c0_3] : memref<128x128xf32, #tpu.memory_space<vmem>>, vector<128x128xf32>
    %cst = arith.constant dense<0.000000e+00> : vector<16x128xf32>
    %3 = tpu.matmul %1, %2, %cst {dimension_numbers = #tpu.dot_dimension_numbers<[1], [0], [0], [1], [0, 0, 1, 1], [], []>} : vector<16x128xf32>, vector<128x128xf32>, vector<16x128xf32> -> vector<16x128xf32>
    %c0_4 = arith.constant 0 : index
    %c0_5 = arith.constant 0 : index
    %4 = vector.load %arg3[%c0_4, %c0_5] : memref<1x128xf32, #tpu.memory_space<vmem>>, vector<1x128xf32>
    %5 = vector.broadcast %4 : vector<1x128xf32> to vector<16x128xf32>
    %6 = arith.addf %3, %5 : vector<16x128xf32>
    %c0_6 = arith.constant 0 : index
    %c0_7 = arith.constant 0 : index
    %7 = vector.load %arg4[%c0_6, %c0_7] : memref<128x128xf32, #tpu.memory_space<vmem>>, vector<128x128xf32>
    %cst_8 = arith.constant dense<0.000000e+00> : vector<16x128xf32>
    %8 = tpu.matmul %1, %7, %cst_8 {dimension_numbers = #tpu.dot_dimension_numbers<[1], [0], [0], [1], [0, 0, 1, 1], [], []>} : vector<16x128xf32>, vector<128x128xf32>, vector<16x128xf32> -> vector<16x128xf32>
    %c0_9 = arith.constant 0 : index
    %c0_10 = arith.constant 0 : index
    %9 = vector.load %arg5[%c0_9, %c0_10] : memref<1x128xf32, #tpu.memory_space<vmem>>, vector<1x128xf32>
    %10 = vector.broadcast %9 : vector<1x128xf32> to vector<16x128xf32>
    %11 = arith.addf %8, %10 : vector<16x128xf32>
    %c0_11 = arith.constant 0 : index
    %c0_12 = arith.constant 0 : index
    %12 = vector.load %arg6[%c0_11, %c0_12] : memref<128x128xf32, #tpu.memory_space<vmem>>, vector<128x128xf32>
    %cst_13 = arith.constant dense<0.000000e+00> : vector<16x128xf32>
    %13 = tpu.matmul %1, %12, %cst_13 {dimension_numbers = #tpu.dot_dimension_numbers<[1], [0], [0], [1], [0, 0, 1, 1], [], []>} : vector<16x128xf32>, vector<128x128xf32>, vector<16x128xf32> -> vector<16x128xf32>
    %c0_14 = arith.constant 0 : index
    %c0_15 = arith.constant 0 : index
    %14 = vector.load %arg7[%c0_14, %c0_15] : memref<1x128xf32, #tpu.memory_space<vmem>>, vector<1x128xf32>
    %15 = vector.broadcast %14 : vector<1x128xf32> to vector<16x128xf32>
    %16 = arith.addf %13, %15 : vector<16x128xf32>
    %cst_16 = arith.constant 0.000000e+00 : f32
    %17 = vector.broadcast %cst_16 : f32 to vector<16x128xf32>
    %18 = vector.extract_strided_slice %6 {offsets = [0, 0], sizes = [16, 32], strides = [1, 1]} : vector<16x128xf32> to vector<16x32xf32>
    %19 = vector.extract_strided_slice %11 {offsets = [0, 0], sizes = [16, 32], strides = [1, 1]} : vector<16x128xf32> to vector<16x32xf32>
    %20 = vector.extract_strided_slice %16 {offsets = [0, 0], sizes = [16, 32], strides = [1, 1]} : vector<16x128xf32> to vector<16x32xf32>
    "tpu.trace_start"() <{level = 10 : i32, message = "qd,kd->qk"}> : () -> ()
    %cst_17 = arith.constant dense<0.000000e+00> : vector<16x16xf32>
    %21 = tpu.matmul %18, %19, %cst_17 {dimension_numbers = #tpu.dot_dimension_numbers<[1], [1], [0], [0], [0, 0, 1, 0], [], []>} : vector<16x32xf32>, vector<16x32xf32>, vector<16x16xf32> -> vector<16x16xf32>
    "tpu.trace_stop"() : () -> ()
    %cst_18 = arith.constant 0.176776692 : f32
    %22 = vector.broadcast %cst_18 : f32 to vector<16x16xf32>
    %23 = arith.mulf %21, %22 : vector<16x16xf32>
    %cst_19 = arith.constant dense<0xFF800000> : vector<16xf32>
    %24 = vector.multi_reduction <maximumf>, %23, %cst_19 [1] : vector<16x16xf32> to vector<16xf32>
    %25 = vector.shape_cast %24 : vector<16xf32> to vector<16x1xf32>
    %26 = vector.broadcast %25 : vector<16x1xf32> to vector<16x16xf32>
    %27 = arith.subf %23, %26 : vector<16x16xf32>
    %28 = math.exp %27 : vector<16x16xf32>
    %cst_20 = arith.constant dense<0.000000e+00> : vector<16xf32>
    %29 = vector.multi_reduction <add>, %28, %cst_20 [1] : vector<16x16xf32> to vector<16xf32>
    %30 = vector.shape_cast %29 : vector<16xf32> to vector<16x1xf32>
    %31 = vector.broadcast %30 : vector<16x1xf32> to vector<16x16xf32>
    %32 = arith.divf %28, %31 : vector<16x16xf32>
    %cst_21 = arith.constant dense<0.000000e+00> : vector<16x32xf32>
    %33 = tpu.matmul %32, %20, %cst_21 {dimension_numbers = #tpu.dot_dimension_numbers<[1], [0], [0], [1], [0, 0, 1, 1], [], []>} : vector<16x16xf32>, vector<16x32xf32>, vector<16x32xf32> -> vector<16x32xf32>
    %c0_22 = arith.constant 0 : index
    %c0_23 = arith.constant 0 : index
    %34 = vector.load %arg8[%c0_22, %c0_23] : memref<128x128xf32, #tpu.memory_space<vmem>>, vector<32x128xf32>
    %cst_24 = arith.constant dense<0.000000e+00> : vector<16x128xf32>
    %35 = tpu.matmul %33, %34, %cst_24 {dimension_numbers = #tpu.dot_dimension_numbers<[1], [0], [0], [1], [0, 0, 1, 1], [], []>} : vector<16x32xf32>, vector<32x128xf32>, vector<16x128xf32> -> vector<16x128xf32>
    %36 = arith.addf %17, %35 : vector<16x128xf32>
    %37 = vector.extract_strided_slice %6 {offsets = [0, 32], sizes = [16, 32], strides = [1, 1]} : vector<16x128xf32> to vector<16x32xf32>
    %38 = vector.extract_strided_slice %11 {offsets = [0, 32], sizes = [16, 32], strides = [1, 1]} : vector<16x128xf32> to vector<16x32xf32>
    %39 = vector.extract_strided_slice %16 {offsets = [0, 32], sizes = [16, 32], strides = [1, 1]} : vector<16x128xf32> to vector<16x32xf32>
    "tpu.trace_start"() <{level = 10 : i32, message = "qd,kd->qk"}> : () -> ()
    %cst_25 = arith.constant dense<0.000000e+00> : vector<16x16xf32>
    %40 = tpu.matmul %37, %38, %cst_25 {dimension_numbers = #tpu.dot_dimension_numbers<[1], [1], [0], [0], [0, 0, 1, 0], [], []>} : vector<16x32xf32>, vector<16x32xf32>, vector<16x16xf32> -> vector<16x16xf32>
    "tpu.trace_stop"() : () -> ()
    %cst_26 = arith.constant 0.176776692 : f32
    %41 = vector.broadcast %cst_26 : f32 to vector<16x16xf32>
    %42 = arith.mulf %40, %41 : vector<16x16xf32>
    %cst_27 = arith.constant dense<0xFF800000> : vector<16xf32>
    %43 = vector.multi_reduction <maximumf>, %42, %cst_27 [1] : vector<16x16xf32> to vector<16xf32>
    %44 = vector.shape_cast %43 : vector<16xf32> to vector<16x1xf32>
    %45 = vector.broadcast %44 : vector<16x1xf32> to vector<16x16xf32>
    %46 = arith.subf %42, %45 : vector<16x16xf32>
    %47 = math.exp %46 : vector<16x16xf32>
    %cst_28 = arith.constant dense<0.000000e+00> : vector<16xf32>
    %48 = vector.multi_reduction <add>, %47, %cst_28 [1] : vector<16x16xf32> to vector<16xf32>
    %49 = vector.shape_cast %48 : vector<16xf32> to vector<16x1xf32>
    %50 = vector.broadcast %49 : vector<16x1xf32> to vector<16x16xf32>
    %51 = arith.divf %47, %50 : vector<16x16xf32>
    %cst_29 = arith.constant dense<0.000000e+00> : vector<16x32xf32>
    %52 = tpu.matmul %51, %39, %cst_29 {dimension_numbers = #tpu.dot_dimension_numbers<[1], [0], [0], [1], [0, 0, 1, 1], [], []>} : vector<16x16xf32>, vector<16x32xf32>, vector<16x32xf32> -> vector<16x32xf32>
    %c32 = arith.constant 32 : index
    %c0_30 = arith.constant 0 : index
    %53 = vector.load %arg8[%c32, %c0_30] : memref<128x128xf32, #tpu.memory_space<vmem>>, vector<32x128xf32>
    %cst_31 = arith.constant dense<0.000000e+00> : vector<16x128xf32>
    %54 = tpu.matmul %52, %53, %cst_31 {dimension_numbers = #tpu.dot_dimension_numbers<[1], [0], [0], [1], [0, 0, 1, 1], [], []>} : vector<16x32xf32>, vector<32x128xf32>, vector<16x128xf32> -> vector<16x128xf32>
    %55 = arith.addf %36, %54 : vector<16x128xf32>
    %56 = vector.extract_strided_slice %6 {offsets = [0, 64], sizes = [16, 32], strides = [1, 1]} : vector<16x128xf32> to vector<16x32xf32>
    %57 = vector.extract_strided_slice %11 {offsets = [0, 64], sizes = [16, 32], strides = [1, 1]} : vector<16x128xf32> to vector<16x32xf32>
    %58 = vector.extract_strided_slice %16 {offsets = [0, 64], sizes = [16, 32], strides = [1, 1]} : vector<16x128xf32> to vector<16x32xf32>
    "tpu.trace_start"() <{level = 10 : i32, message = "qd,kd->qk"}> : () -> ()
    %cst_32 = arith.constant dense<0.000000e+00> : vector<16x16xf32>
    %59 = tpu.matmul %56, %57, %cst_32 {dimension_numbers = #tpu.dot_dimension_numbers<[1], [1], [0], [0], [0, 0, 1, 0], [], []>} : vector<16x32xf32>, vector<16x32xf32>, vector<16x16xf32> -> vector<16x16xf32>
    "tpu.trace_stop"() : () -> ()
    %cst_33 = arith.constant 0.176776692 : f32
    %60 = vector.broadcast %cst_33 : f32 to vector<16x16xf32>
    %61 = arith.mulf %59, %60 : vector<16x16xf32>
    %cst_34 = arith.constant dense<0xFF800000> : vector<16xf32>
    %62 = vector.multi_reduction <maximumf>, %61, %cst_34 [1] : vector<16x16xf32> to vector<16xf32>
    %63 = vector.shape_cast %62 : vector<16xf32> to vector<16x1xf32>
    %64 = vector.broadcast %63 : vector<16x1xf32> to vector<16x16xf32>
    %65 = arith.subf %61, %64 : vector<16x16xf32>
    %66 = math.exp %65 : vector<16x16xf32>
    %cst_35 = arith.constant dense<0.000000e+00> : vector<16xf32>
    %67 = vector.multi_reduction <add>, %66, %cst_35 [1] : vector<16x16xf32> to vector<16xf32>
    %68 = vector.shape_cast %67 : vector<16xf32> to vector<16x1xf32>
    %69 = vector.broadcast %68 : vector<16x1xf32> to vector<16x16xf32>
    %70 = arith.divf %66, %69 : vector<16x16xf32>
    %cst_36 = arith.constant dense<0.000000e+00> : vector<16x32xf32>
    %71 = tpu.matmul %70, %58, %cst_36 {dimension_numbers = #tpu.dot_dimension_numbers<[1], [0], [0], [1], [0, 0, 1, 1], [], []>} : vector<16x16xf32>, vector<16x32xf32>, vector<16x32xf32> -> vector<16x32xf32>
    %c64 = arith.constant 64 : index
    %c0_37 = arith.constant 0 : index
    %72 = vector.load %arg8[%c64, %c0_37] : memref<128x128xf32, #tpu.memory_space<vmem>>, vector<32x128xf32>
    %cst_38 = arith.constant dense<0.000000e+00> : vector<16x128xf32>
    %73 = tpu.matmul %71, %72, %cst_38 {dimension_numbers = #tpu.dot_dimension_numbers<[1], [0], [0], [1], [0, 0, 1, 1], [], []>} : vector<16x32xf32>, vector<32x128xf32>, vector<16x128xf32> -> vector<16x128xf32>
    %74 = arith.addf %55, %73 : vector<16x128xf32>
    %75 = vector.extract_strided_slice %6 {offsets = [0, 96], sizes = [16, 32], strides = [1, 1]} : vector<16x128xf32> to vector<16x32xf32>
    %76 = vector.extract_strided_slice %11 {offsets = [0, 96], sizes = [16, 32], strides = [1, 1]} : vector<16x128xf32> to vector<16x32xf32>
    %77 = vector.extract_strided_slice %16 {offsets = [0, 96], sizes = [16, 32], strides = [1, 1]} : vector<16x128xf32> to vector<16x32xf32>
    "tpu.trace_start"() <{level = 10 : i32, message = "qd,kd->qk"}> : () -> ()
    %cst_39 = arith.constant dense<0.000000e+00> : vector<16x16xf32>
    %78 = tpu.matmul %75, %76, %cst_39 {dimension_numbers = #tpu.dot_dimension_numbers<[1], [1], [0], [0], [0, 0, 1, 0], [], []>} : vector<16x32xf32>, vector<16x32xf32>, vector<16x16xf32> -> vector<16x16xf32>
    "tpu.trace_stop"() : () -> ()
    %cst_40 = arith.constant 0.176776692 : f32
    %79 = vector.broadcast %cst_40 : f32 to vector<16x16xf32>
    %80 = arith.mulf %78, %79 : vector<16x16xf32>
    %cst_41 = arith.constant dense<0xFF800000> : vector<16xf32>
    %81 = vector.multi_reduction <maximumf>, %80, %cst_41 [1] : vector<16x16xf32> to vector<16xf32>
    %82 = vector.shape_cast %81 : vector<16xf32> to vector<16x1xf32>
    %83 = vector.broadcast %82 : vector<16x1xf32> to vector<16x16xf32>
    %84 = arith.subf %80, %83 : vector<16x16xf32>
    %85 = math.exp %84 : vector<16x16xf32>
    %cst_42 = arith.constant dense<0.000000e+00> : vector<16xf32>
    %86 = vector.multi_reduction <add>, %85, %cst_42 [1] : vector<16x16xf32> to vector<16xf32>
    %87 = vector.shape_cast %86 : vector<16xf32> to vector<16x1xf32>
    %88 = vector.broadcast %87 : vector<16x1xf32> to vector<16x16xf32>
    %89 = arith.divf %85, %88 : vector<16x16xf32>
    %cst_43 = arith.constant dense<0.000000e+00> : vector<16x32xf32>
    %90 = tpu.matmul %89, %77, %cst_43 {dimension_numbers = #tpu.dot_dimension_numbers<[1], [0], [0], [1], [0, 0, 1, 1], [], []>} : vector<16x16xf32>, vector<16x32xf32>, vector<16x32xf32> -> vector<16x32xf32>
    %c96 = arith.constant 96 : index
    %c0_44 = arith.constant 0 : index
    %91 = vector.load %arg8[%c96, %c0_44] : memref<128x128xf32, #tpu.memory_space<vmem>>, vector<32x128xf32>
    %cst_45 = arith.constant dense<0.000000e+00> : vector<16x128xf32>
    %92 = tpu.matmul %90, %91, %cst_45 {dimension_numbers = #tpu.dot_dimension_numbers<[1], [0], [0], [1], [0, 0, 1, 1], [], []>} : vector<16x32xf32>, vector<32x128xf32>, vector<16x128xf32> -> vector<16x128xf32>
    %93 = arith.addf %74, %92 : vector<16x128xf32>
    %c0_46 = arith.constant 0 : index
    %c0_47 = arith.constant 0 : index
    %94 = vector.load %arg9[%c0_46, %c0_47] : memref<1x128xf32, #tpu.memory_space<vmem>>, vector<1x128xf32>
    %95 = vector.broadcast %94 : vector<1x128xf32> to vector<16x128xf32>
    %96 = arith.addf %93, %95 : vector<16x128xf32>
    %97 = arith.addf %1, %96 : vector<16x128xf32>
    %c0_48 = arith.constant 0 : index
    %c0_49 = arith.constant 0 : index
    %98 = vector.load %arg10[%c0_48, %c0_49] : memref<1x128xf32, #tpu.memory_space<vmem>>, vector<1x128xf32>
    %c0_50 = arith.constant 0 : index
    %c0_51 = arith.constant 0 : index
    %99 = vector.load %arg11[%c0_50, %c0_51] : memref<1x128xf32, #tpu.memory_space<vmem>>, vector<1x128xf32>
    %cst_52 = arith.constant dense<0.000000e+00> : vector<16xf32>
    %100 = vector.multi_reduction <add>, %97, %cst_52 [1] : vector<16x128xf32> to vector<16xf32>
    %101 = vector.shape_cast %100 : vector<16xf32> to vector<16x1xf32>
    %cst_53 = arith.constant 1.280000e+02 : f32
    %102 = vector.broadcast %cst_53 : f32 to vector<16x1xf32>
    %103 = arith.divf %101, %102 : vector<16x1xf32>
    %104 = vector.broadcast %103 : vector<16x1xf32> to vector<16x128xf32>
    %105 = arith.subf %97, %104 : vector<16x128xf32>
    %106 = arith.mulf %105, %105 : vector<16x128xf32>
    %cst_54 = arith.constant dense<0.000000e+00> : vector<16xf32>
    %107 = vector.multi_reduction <add>, %106, %cst_54 [1] : vector<16x128xf32> to vector<16xf32>
    %108 = vector.shape_cast %107 : vector<16xf32> to vector<16x1xf32>
    %cst_55 = arith.constant 1.280000e+02 : f32
    %109 = vector.broadcast %cst_55 : f32 to vector<16x1xf32>
    %110 = arith.divf %108, %109 : vector<16x1xf32>
    %cst_56 = arith.constant 9.99999974E-6 : f32
    %111 = vector.broadcast %cst_56 : f32 to vector<16x1xf32>
    %112 = arith.addf %110, %111 : vector<16x1xf32>
    %113 = math.rsqrt %112 : vector<16x1xf32>
    %114 = vector.broadcast %113 : vector<16x1xf32> to vector<16x128xf32>
    %115 = arith.mulf %105, %114 : vector<16x128xf32>
    %116 = vector.broadcast %98 : vector<1x128xf32> to vector<16x128xf32>
    %117 = arith.mulf %115, %116 : vector<16x128xf32>
    %118 = vector.broadcast %99 : vector<1x128xf32> to vector<16x128xf32>
    %119 = arith.addf %117, %118 : vector<16x128xf32>
    %c0_57 = arith.constant 0 : index
    %c0_58 = arith.constant 0 : index
    %120 = vector.load %arg12[%c0_57, %c0_58] : memref<128x256xf32, #tpu.memory_space<vmem>>, vector<128x256xf32>
    %cst_59 = arith.constant dense<0.000000e+00> : vector<16x256xf32>
    %121 = tpu.matmul %119, %120, %cst_59 {dimension_numbers = #tpu.dot_dimension_numbers<[1], [0], [0], [1], [0, 0, 1, 1], [], []>} : vector<16x128xf32>, vector<128x256xf32>, vector<16x256xf32> -> vector<16x256xf32>
    %c0_60 = arith.constant 0 : index
    %c0_61 = arith.constant 0 : index
    %122 = vector.load %arg13[%c0_60, %c0_61] : memref<1x256xf32, #tpu.memory_space<vmem>>, vector<1x256xf32>
    %123 = vector.broadcast %122 : vector<1x256xf32> to vector<16x256xf32>
    %124 = arith.addf %121, %123 : vector<16x256xf32>
    %cst_62 = arith.constant 0.000000e+00 : f32
    %125 = vector.broadcast %cst_62 : f32 to vector<16x256xf32>
    %126 = arith.maximumf %124, %125 : vector<16x256xf32>
    %c0_63 = arith.constant 0 : index
    %c0_64 = arith.constant 0 : index
    %127 = vector.load %arg14[%c0_63, %c0_64] : memref<256x128xf32, #tpu.memory_space<vmem>>, vector<256x128xf32>
    %cst_65 = arith.constant dense<0.000000e+00> : vector<16x128xf32>
    %128 = tpu.matmul %126, %127, %cst_65 {dimension_numbers = #tpu.dot_dimension_numbers<[1], [0], [0], [1], [0, 0, 1, 1], [], []>} : vector<16x256xf32>, vector<256x128xf32>, vector<16x128xf32> -> vector<16x128xf32>
    %c0_66 = arith.constant 0 : index
    %c0_67 = arith.constant 0 : index
    %129 = vector.load %arg15[%c0_66, %c0_67] : memref<1x128xf32, #tpu.memory_space<vmem>>, vector<1x128xf32>
    %130 = vector.broadcast %129 : vector<1x128xf32> to vector<16x128xf32>
    %131 = arith.addf %128, %130 : vector<16x128xf32>
    %132 = arith.addf %119, %131 : vector<16x128xf32>
    %c0_68 = arith.constant 0 : index
    %c0_69 = arith.constant 0 : index
    %133 = vector.load %arg16[%c0_68, %c0_69] : memref<1x128xf32, #tpu.memory_space<vmem>>, vector<1x128xf32>
    %c0_70 = arith.constant 0 : index
    %c0_71 = arith.constant 0 : index
    %134 = vector.load %arg17[%c0_70, %c0_71] : memref<1x128xf32, #tpu.memory_space<vmem>>, vector<1x128xf32>
    %cst_72 = arith.constant dense<0.000000e+00> : vector<16xf32>
    %135 = vector.multi_reduction <add>, %132, %cst_72 [1] : vector<16x128xf32> to vector<16xf32>
    %136 = vector.shape_cast %135 : vector<16xf32> to vector<16x1xf32>
    %cst_73 = arith.constant 1.280000e+02 : f32
    %137 = vector.broadcast %cst_73 : f32 to vector<16x1xf32>
    %138 = arith.divf %136, %137 : vector<16x1xf32>
    %139 = vector.broadcast %138 : vector<16x1xf32> to vector<16x128xf32>
    %140 = arith.subf %132, %139 : vector<16x128xf32>
    %141 = arith.mulf %140, %140 : vector<16x128xf32>
    %cst_74 = arith.constant dense<0.000000e+00> : vector<16xf32>
    %142 = vector.multi_reduction <add>, %141, %cst_74 [1] : vector<16x128xf32> to vector<16xf32>
    %143 = vector.shape_cast %142 : vector<16xf32> to vector<16x1xf32>
    %cst_75 = arith.constant 1.280000e+02 : f32
    %144 = vector.broadcast %cst_75 : f32 to vector<16x1xf32>
    %145 = arith.divf %143, %144 : vector<16x1xf32>
    %cst_76 = arith.constant 9.99999974E-6 : f32
    %146 = vector.broadcast %cst_76 : f32 to vector<16x1xf32>
    %147 = arith.addf %145, %146 : vector<16x1xf32>
    %148 = math.rsqrt %147 : vector<16x1xf32>
    %149 = vector.broadcast %148 : vector<16x1xf32> to vector<16x128xf32>
    %150 = arith.mulf %140, %149 : vector<16x128xf32>
    %151 = vector.broadcast %133 : vector<1x128xf32> to vector<16x128xf32>
    %152 = arith.mulf %150, %151 : vector<16x128xf32>
    %153 = vector.broadcast %134 : vector<1x128xf32> to vector<16x128xf32>
    %154 = arith.addf %152, %153 : vector<16x128xf32>
    %c0_77 = arith.constant 0 : index
    %c0_78 = arith.constant 0 : index
    %c0_79 = arith.constant 0 : index
    %155 = vector.load %arg18[%c0_77, %c0_78, %c0_79] : memref<1x16x128xf32, #tpu.memory_space<vmem>>, vector<1x16x128xf32>
    %156 = vector.shape_cast %155 : vector<1x16x128xf32> to vector<16x128xf32>
    %157 = vector.shape_cast %154 : vector<16x128xf32> to vector<1x16x128xf32>
    tpu.vector_store %arg18[%c0_77, %c0_78, %c0_79], %157 {strides = array<i32>} : memref<1x16x128xf32, #tpu.memory_space<vmem>>, vector<1x16x128xf32>,
    return
  }
  func.func @transform_0(%arg0: i32) -> (i32, i32, i32) {
    %c0_i32 = arith.constant 0 : i32
    %c0_i32_0 = arith.constant 0 : i32
    %c0_i32_1 = arith.constant 0 : i32
    return %arg0, %c0_i32, %c0_i32_0 : i32, i32, i32
  }
  func.func @transform_1(%arg0: i32) -> (i32, i32) {
    %c0_i32 = arith.constant 0 : i32
    %c0_i32_0 = arith.constant 0 : i32
    %c0_i32_1 = arith.constant 0 : i32
    return %c0_i32, %c0_i32_0 : i32, i32
  }
  func.func @transform_2(%arg0: i32) -> (i32, i32) {
    %c0_i32 = arith.constant 0 : i32
    %c0_i32_0 = arith.constant 0 : i32
    %c0_i32_1 = arith.constant 0 : i32
    return %c0_i32, %c0_i32_0 : i32, i32
  }
  func.func @transform_3(%arg0: i32) -> (i32, i32) {
    %c0_i32 = arith.constant 0 : i32
    %c0_i32_0 = arith.constant 0 : i32
    %c0_i32_1 = arith.constant 0 : i32
    return %c0_i32, %c0_i32_0 : i32, i32
  }
  func.func @transform_4(%arg0: i32) -> (i32, i32) {
    %c0_i32 = arith.constant 0 : i32
    %c0_i32_0 = arith.constant 0 : i32
    %c0_i32_1 = arith.constant 0 : i32
    return %c0_i32, %c0_i32_0 : i32, i32
  }
  func.func @transform_5(%arg0: i32) -> (i32, i32) {
    %c0_i32 = arith.constant 0 : i32
    %c0_i32_0 = arith.constant 0 : i32
    %c0_i32_1 = arith.constant 0 : i32
    return %c0_i32, %c0_i32_0 : i32, i32
  }
  func.func @transform_6(%arg0: i32) -> (i32, i32) {
    %c0_i32 = arith.constant 0 : i32
    %c0_i32_0 = arith.constant 0 : i32
    %c0_i32_1 = arith.constant 0 : i32
    return %c0_i32, %c0_i32_0 : i32, i32
  }
  func.func @transform_7(%arg0: i32) -> (i32, i32) {
    %c0_i32 = arith.constant 0 : i32
    %c0_i32_0 = arith.constant 0 : i32
    %c0_i32_1 = arith.constant 0 : i32
    return %c0_i32, %c0_i32_0 : i32, i32
  }
  func.func @transform_8(%arg0: i32) -> (i32, i32) {
    %c0_i32 = arith.constant 0 : i32
    %c0_i32_0 = arith.constant 0 : i32
    %c0_i32_1 = arith.constant 0 : i32
    return %c0_i32, %c0_i32_0 : i32, i32
  }
  func.func @transform_9(%arg0: i32) -> (i32, i32) {
    %c0_i32 = arith.constant 0 : i32
    %c0_i32_0 = arith.constant 0 : i32
    %c0_i32_1 = arith.constant 0 : i32
    return %c0_i32, %c0_i32_0 : i32, i32
  }
  func.func @transform_10(%arg0: i32) -> (i32, i32) {
    %c0_i32 = arith.constant 0 : i32
    %c0_i32_0 = arith.constant 0 : i32
    %c0_i32_1 = arith.constant 0 : i32
    return %c0_i32, %c0_i32_0 : i32, i32
  }
  func.func @transform_11(%arg0: i32) -> (i32, i32) {
    %c0_i32 = arith.constant 0 : i32
    %c0_i32_0 = arith.constant 0 : i32
    %c0_i32_1 = arith.constant 0 : i32
    return %c0_i32, %c0_i32_0 : i32, i32
  }
  func.func @transform_12(%arg0: i32) -> (i32, i32) {
    %c0_i32 = arith.constant 0 : i32
    %c0_i32_0 = arith.constant 0 : i32
    %c0_i32_1 = arith.constant 0 : i32
    return %c0_i32, %c0_i32_0 : i32, i32
  }
  func.func @transform_13(%arg0: i32) -> (i32, i32) {
    %c0_i32 = arith.constant 0 : i32
    %c0_i32_0 = arith.constant 0 : i32
    %c0_i32_1 = arith.constant 0 : i32
    return %c0_i32, %c0_i32_0 : i32, i32
  }
  func.func @transform_14(%arg0: i32) -> (i32, i32) {
    %c0_i32 = arith.constant 0 : i32
    %c0_i32_0 = arith.constant 0 : i32
    %c0_i32_1 = arith.constant 0 : i32
    return %c0_i32, %c0_i32_0 : i32, i32
  }
  func.func @transform_15(%arg0: i32) -> (i32, i32) {
    %c0_i32 = arith.constant 0 : i32
    %c0_i32_0 = arith.constant 0 : i32
    %c0_i32_1 = arith.constant 0 : i32
    return %c0_i32, %c0_i32_0 : i32, i32
  }
  func.func @transform_16(%arg0: i32) -> (i32, i32) {
    %c0_i32 = arith.constant 0 : i32
    %c0_i32_0 = arith.constant 0 : i32
    %c0_i32_1 = arith.constant 0 : i32
    return %c0_i32, %c0_i32_0 : i32, i32
  }
  func.func @transform_17(%arg0: i32) -> (i32, i32, i32) {
    %c0_i32 = arith.constant 0 : i32
    %c0_i32_0 = arith.constant 0 : i32
    %c0_i32_1 = arith.constant 0 : i32
    return %arg0, %c0_i32, %c0_i32_0 : i32, i32, i32
  }
}

</mosaic_0001>

<llo_original>
// kernel: tpu_custom_call.1
$region0: #{tpu_custom_call.1}
  #allocation0 [shape = 'u32[]', space=smem, size = 0x4, offset = 0x4, fixed_abs, tag = 'smem constant byte address 0x4 - core index']
  #allocation1 [shape = 'u32[72,128]{1,0:T(1,128)}', space=vmem, size = 0x9000, scoped, tag = 'internal scratch']
  %s0 = inlined_call_operand.hbm [shape: f32[2,16,128], index: 0, kind: input, shape index: {}]
  %s1 = inlined_call_operand.hbm [shape: f32[128,128], index: 1, kind: input, shape index: {}]
  %s2 = inlined_call_operand.vmem [shape: f32[1,128], index: 2, kind: input, shape index: {}]
  %s3 = inlined_call_operand.hbm [shape: f32[128,128], index: 3, kind: input, shape index: {}]
  %s4 = inlined_call_operand.hbm [shape: f32[1,128], index: 4, kind: input, shape index: {}]
  %s5 = inlined_call_operand.hbm [shape: f32[128,128], index: 5, kind: input, shape index: {}]
  %s6 = inlined_call_operand.vmem [shape: f32[1,128], index: 6, kind: input, shape index: {}]
  %s7 = inlined_call_operand.hbm [shape: f32[128,128], index: 7, kind: input, shape index: {}]
  %s8 = inlined_call_operand.vmem [shape: f32[1,128], index: 8, kind: input, shape index: {}]
  %s9 = inlined_call_operand.vmem [shape: f32[1,128], index: 9, kind: input, shape index: {}]
  %s10 = inlined_call_operand.vmem [shape: f32[1,128], index: 10, kind: input, shape index: {}]
  %s11 = inlined_call_operand.hbm [shape: f32[128,256], index: 11, kind: input, shape index: {}]
  %s12 = inlined_call_operand.vmem [shape: f32[1,256], index: 12, kind: input, shape index: {}]
  %s13 = inlined_call_operand.hbm [shape: f32[256,128], index: 13, kind: input, shape index: {}]
  %s14 = inlined_call_operand.vmem [shape: f32[1,128], index: 14, kind: input, shape index: {}]
  %s15 = inlined_call_operand.vmem [shape: f32[1,128], index: 15, kind: input, shape index: {}]
  %s16 = inlined_call_operand.vmem [shape: f32[1,128], index: 16, kind: input, shape index: {}]
  %s17 = inlined_call_operand.hbm [shape: f32[2,16,128], index: 17, kind: output, shape index: {}]
  %s18 = sld [smem:[#allocation0]]
  $region133: #{tpu_custom_call.1} parent=0
    _
  %s20 = ssub.s32 1, %s18
  %s21 = scalar_select 0, %s20, %s18
  $region1: #{tpu_custom_call.1} parent=0
    #allocation2 [shape = 'u8[16384]{0}', space=vmem, size = 0x4000, scoped, tag = 'input window, operand 0']
    #allocation3 [shape = 's32[2]{0}', space=sflag, size = 0x8, scoped, tag = 'scoped memory for tpu_custom_call.1']
    #allocation4 [shape = 's32[2]{0}', space=sflag, size = 0x8, scoped, tag = 'scoped memory for tpu_custom_call.1']
    #allocation5 [shape = 'u8[65536]{0}', space=vmem, size = 0x10000, scoped, tag = 'input window, operand 1, single buffered']
    #allocation6 [shape = 's32[1]{0}', space=sflag, size = 0x4, scoped, tag = 'scoped memory for tpu_custom_call.1']
    #allocation7 [shape = 'u8[65536]{0}', space=vmem, size = 0x10000, scoped, tag = 'input window, operand 3, single buffered']
    #allocation8 [shape = 'u8[512]{0}', space=vmem, size = 0x400, scoped, tag = 'input window, operand 4, single buffered']
    #allocation9 [shape = 's32[1]{0}', space=sflag, size = 0x4, scoped, tag = 'scoped memory for tpu_custom_call.1']
    #allocation10 [shape = 'u8[65536]{0}', space=vmem, size = 0x10000, scoped, tag = 'input window, operand 5, single buffered']
    #allocation11 [shape = 'u8[65536]{0}', space=vmem, size = 0x10000, scoped, tag = 'input window, operand 7, single buffered']
    #allocation12 [shape = 's32[1]{0}', space=sflag, size = 0x4, scoped, tag = 'scoped memory for tpu_custom_call.1']
    #allocation13 [shape = 'u8[131072]{0}', space=vmem, size = 0x20000, scoped, tag = 'input window, operand 11, single buffered']
    #allocation14 [shape = 'u8[131072]{0}', space=vmem, size = 0x20000, scoped, tag = 'input window, operand 13, single buffered']
    #allocation15 [shape = 's32[1]{0}', space=sflag, size = 0x4, scoped, tag = 'scoped memory for tpu_custom_call.1']
    #allocation16 [shape = 'u8[16384]{0}', space=vmem, size = 0x4000, scoped, tag = 'output window, operand 0']
    %22 = vsyncpa [#allocation3], 0
    %s23 = scalar_lea.sflag [#allocation3], 1
    %24 = vsyncpa %s23, 0
    %25 = vsyncpa [#allocation6], 0
    %26 = vsyncpa [#allocation9], 0
    %27 = vsyncpa [#allocation12], 0
    %28 = vsyncpa [#allocation15], 0
    %29 = vsyncpa [#allocation4], 0
    %s30 = scalar_lea.sflag [#allocation4], 1
    %31 = vsyncpa %s30, 0
    loop: start=0, step=1, limit=4
    $region2: #{tpu_custom_call.1} parent=1 // loop_pre_header
      _
    $region3: #{tpu_custom_call.1} parent=1 // loop_header
      %s33 = sphi 0, %s37
      %p34 = scmp.ge.s32.totalorder %s33, 4
      %s43 = sphi 0, %s45
      %s46 = sphi 0, %s43
      %s47 = sphi 0, %s46
      %s63 = sphi 0, %s47
      %s67 = sphi 0, %s67
      %s69 = sphi 0, %s67
      %s70 = sphi 0, %s69
      %s84 = sphi 0, %s70
      %s88 = sphi 0, %s88
      %s90 = sphi 0, %s88
      %s91 = sphi 0, %s90
      %s105 = sphi 0, %s91
      %s109 = sphi 0, %s109
      %s111 = sphi 0, %s109
      %s112 = sphi 0, %s111
      %s126 = sphi 0, %s112
      %s130 = sphi 0, %s130
      %s132 = sphi 0, %s130
      %s133 = sphi 0, %s132
      %s147 = sphi 0, %s133
      %s151 = sphi 0, %s151
      %s153 = sphi 0, %s151
      %s154 = sphi 0, %s153
      %s168 = sphi 0, %s154
      %s172 = sphi 0, %s172
      %s174 = sphi 0, %s172
      %s175 = sphi 0, %s174
      %s189 = sphi 0, %s175
      %s193 = sphi 0, %s193
      %s195 = sphi 0, %s193
      %s196 = sphi 0, %s195
      %s210 = sphi 0, %s196
      %s214 = sphi 0, %s214
      %s216 = sphi 0, %s214
      %s217 = sphi 0, %s216
      %s231 = sphi 0, %s217
      %s235 = sphi 0, %s235
      %s237 = sphi 0, %s235
      %s238 = sphi 0, %s237
      %s252 = sphi 0, %s238
      %s256 = sphi 0, %s256
      %s258 = sphi 0, %s256
      %s259 = sphi 0, %s258
      %s273 = sphi 0, %s259
      %s277 = sphi 0, %s277
      %s279 = sphi 0, %s277
      %s280 = sphi 0, %s279
      %s294 = sphi 0, %s280
      %s298 = sphi 0, %s298
      %s300 = sphi 0, %s298
      %s301 = sphi 0, %s300
      %s315 = sphi 0, %s301
      %s319 = sphi 0, %s319
      %s321 = sphi 0, %s319
      %s322 = sphi 0, %s321
      %s336 = sphi 0, %s322
      %s340 = sphi 0, %s340
      %s342 = sphi 0, %s340
      %s343 = sphi 0, %s342
      %s357 = sphi 0, %s343
      %s361 = sphi 0, %s361
      %s363 = sphi 0, %s361
      %s364 = sphi 0, %s363
      %s378 = sphi 0, %s364
      %s382 = sphi 0, %s382
      %s384 = sphi 0, %s382
      %s385 = sphi 0, %s384
      %s399 = sphi 0, %s385
      %s405 = sphi 0, %s407
      %s408 = sphi 0, %s405
      %s409 = sphi 0, %s408
      %s425 = sphi 0, %s409
    $region4: #{tpu_custom_call.1} parent=1 // loop_header_branch
      %36 = sbr.rel (%p34) target = $region8
    $region5: #{tpu_custom_call.1} parent=1 // loop_body
      %s38 = ssub.s32 %s33, 1
      %s39 = ssub.s32 %s33, 2
      %s40 = sadd.s32 %s33, 1
      %s41 = ssub.s32 %s33, %s40
      %p42 = scmp.eq.s32.totalorder %s41, 0
      %s44 = sadd.s32 %s43, 1
      %s45 = scalar_select %p42, %s43, %s44
      %p48 = pneg %p42
      %p49 = scmp.eq.s32.totalorder %s33, 1
      %p50 = por %p48, %p49
      %p51 = scmp.ne.s32.totalorder %s43, %s46
      %p52 = scmp.eq.s32.totalorder %s33, 0
      %p53 = por %p51, %p52
      %p54 = scmp.ne.s32.totalorder %s43, %s46
      %p55 = scmp.eq.s32.totalorder %s38, 1
      %p56 = por %p54, %p55
      %p57 = scmp.ne.s32.totalorder %s46, %s47
      %p58 = scmp.eq.s32.totalorder %s38, 0
      %p59 = por %p57, %p58
      %p60 = scmp.ne.s32.totalorder %s46, %s47
      %p61 = scmp.eq.s32.totalorder %s39, 1
      %p62 = por %p60, %p61
      %p64 = scmp.ne.s32.totalorder %s47, %s63
      %p65 = scmp.eq.s32.totalorder %s39, 0
      %p66 = por %p64, %p65
      %s68 = sadd.s32 %s67, 1
      %p71 = scmp.eq.s32.totalorder %s33, 1
      %p72 = scmp.ne.s32.totalorder %s67, %s69
      %p73 = scmp.eq.s32.totalorder %s33, 0
      %p74 = por %p72, %p73
      %p75 = scmp.ne.s32.totalorder %s67, %s69
      %p76 = scmp.eq.s32.totalorder %s38, 1
      %p77 = por %p75, %p76
      %p78 = scmp.ne.s32.totalorder %s69, %s70
      %p79 = scmp.eq.s32.totalorder %s38, 0
      %p80 = por %p78, %p79
      %p81 = scmp.ne.s32.totalorder %s69, %s70
      %p82 = scmp.eq.s32.totalorder %s39, 1
      %p83 = por %p81, %p82
      %p85 = scmp.ne.s32.totalorder %s70, %s84
      %p86 = scmp.eq.s32.totalorder %s39, 0
      %p87 = por %p85, %p86
      %s89 = sadd.s32 %s88, 1
      %p92 = scmp.eq.s32.totalorder %s33, 1
      %p93 = scmp.ne.s32.totalorder %s88, %s90
      %p94 = scmp.eq.s32.totalorder %s33, 0
      %p95 = por %p93, %p94
      %p96 = scmp.ne.s32.totalorder %s88, %s90
      %p97 = scmp.eq.s32.totalorder %s38, 1
      %p98 = por %p96, %p97
      %p99 = scmp.ne.s32.totalorder %s90, %s91
      %p100 = scmp.eq.s32.totalorder %s38, 0
      %p101 = por %p99, %p100
      %p102 = scmp.ne.s32.totalorder %s90, %s91
      %p103 = scmp.eq.s32.totalorder %s39, 1
      %p104 = por %p102, %p103
      %p106 = scmp.ne.s32.totalorder %s91, %s105
      %p107 = scmp.eq.s32.totalorder %s39, 0
      %p108 = por %p106, %p107
      %s110 = sadd.s32 %s109, 1
      %p113 = scmp.eq.s32.totalorder %s33, 1
      %p114 = scmp.ne.s32.totalorder %s109, %s111
      %p115 = scmp.eq.s32.totalorder %s33, 0
      %p116 = por %p114, %p115
      %p117 = scmp.ne.s32.totalorder %s109, %s111
      %p118 = scmp.eq.s32.totalorder %s38, 1
      %p119 = por %p117, %p118
      %p120 = scmp.ne.s32.totalorder %s111, %s112
      %p121 = scmp.eq.s32.totalorder %s38, 0
      %p122 = por %p120, %p121
      %p123 = scmp.ne.s32.totalorder %s111, %s112
      %p124 = scmp.eq.s32.totalorder %s39, 1
      %p125 = por %p123, %p124
      %p127 = scmp.ne.s32.totalorder %s112, %s126
      %p128 = scmp.eq.s32.totalorder %s39, 0
      %p129 = por %p127, %p128
      %s131 = sadd.s32 %s130, 1
      %p134 = scmp.eq.s32.totalorder %s33, 1
      %p135 = scmp.ne.s32.totalorder %s130, %s132
      %p136 = scmp.eq.s32.totalorder %s33, 0
      %p137 = por %p135, %p136
      %p138 = scmp.ne.s32.totalorder %s130, %s132
      %p139 = scmp.eq.s32.totalorder %s38, 1
      %p140 = por %p138, %p139
      %p141 = scmp.ne.s32.totalorder %s132, %s133
      %p142 = scmp.eq.s32.totalorder %s38, 0
      %p143 = por %p141, %p142
      %p144 = scmp.ne.s32.totalorder %s132, %s133
      %p145 = scmp.eq.s32.totalorder %s39, 1
      %p146 = por %p144, %p145
      %p148 = scmp.ne.s32.totalorder %s133, %s147
      %p149 = scmp.eq.s32.totalorder %s39, 0
      %p150 = por %p148, %p149
      %s152 = sadd.s32 %s151, 1
      %p155 = scmp.eq.s32.totalorder %s33, 1
      %p156 = scmp.ne.s32.totalorder %s151, %s153
      %p157 = scmp.eq.s32.totalorder %s33, 0
      %p158 = por %p156, %p157
      %p159 = scmp.ne.s32.totalorder %s151, %s153
      %p160 = scmp.eq.s32.totalorder %s38, 1
      %p161 = por %p159, %p160
      %p162 = scmp.ne.s32.totalorder %s153, %s154
      %p163 = scmp.eq.s32.totalorder %s38, 0
      %p164 = por %p162, %p163
      %p165 = scmp.ne.s32.totalorder %s153, %s154
      %p166 = scmp.eq.s32.totalorder %s39, 1
      %p167 = por %p165, %p166
      %p169 = scmp.ne.s32.totalorder %s154, %s168
      %p170 = scmp.eq.s32.totalorder %s39, 0
      %p171 = por %p169, %p170
      %s173 = sadd.s32 %s172, 1
      %p176 = scmp.eq.s32.totalorder %s33, 1
      %p177 = scmp.ne.s32.totalorder %s172, %s174
      %p178 = scmp.eq.s32.totalorder %s33, 0
      %p179 = por %p177, %p178
      %p180 = scmp.ne.s32.totalorder %s172, %s174
      %p181 = scmp.eq.s32.totalorder %s38, 1
      %p182 = por %p180, %p181
      %p183 = scmp.ne.s32.totalorder %s174, %s175
      %p184 = scmp.eq.s32.totalorder %s38, 0
      %p185 = por %p183, %p184
      %p186 = scmp.ne.s32.totalorder %s174, %s175
      %p187 = scmp.eq.s32.totalorder %s39, 1
      %p188 = por %p186, %p187
      %p190 = scmp.ne.s32.totalorder %s175, %s189
      %p191 = scmp.eq.s32.totalorder %s39, 0
      %p192 = por %p190, %p191
      %s194 = sadd.s32 %s193, 1
      %p197 = scmp.eq.s32.totalorder %s33, 1
      %p198 = scmp.ne.s32.totalorder %s193, %s195
      %p199 = scmp.eq.s32.totalorder %s33, 0
      %p200 = por %p198, %p199
      %p201 = scmp.ne.s32.totalorder %s193, %s195
      %p202 = scmp.eq.s32.totalorder %s38, 1
      %p203 = por %p201, %p202
      %p204 = scmp.ne.s32.totalorder %s195, %s196
      %p205 = scmp.eq.s32.totalorder %s38, 0
      %p206 = por %p204, %p205
      %p207 = scmp.ne.s32.totalorder %s195, %s196
      %p208 = scmp.eq.s32.totalorder %s39, 1
      %p209 = por %p207, %p208
      %p211 = scmp.ne.s32.totalorder %s196, %s210
      %p212 = scmp.eq.s32.totalorder %s39, 0
      %p213 = por %p211, %p212
      %s215 = sadd.s32 %s214, 1
      %p218 = scmp.eq.s32.totalorder %s33, 1
      %p219 = scmp.ne.s32.totalorder %s214, %s216
      %p220 = scmp.eq.s32.totalorder %s33, 0
      %p221 = por %p219, %p220
      %p222 = scmp.ne.s32.totalorder %s214, %s216
      %p223 = scmp.eq.s32.totalorder %s38, 1
      %p224 = por %p222, %p223
      %p225 = scmp.ne.s32.totalorder %s216, %s217
      %p226 = scmp.eq.s32.totalorder %s38, 0
      %p227 = por %p225, %p226
      %p228 = scmp.ne.s32.totalorder %s216, %s217
      %p229 = scmp.eq.s32.totalorder %s39, 1
      %p230 = por %p228, %p229
      %p232 = scmp.ne.s32.totalorder %s217, %s231
      %p233 = scmp.eq.s32.totalorder %s39, 0
      %p234 = por %p232, %p233
      %s236 = sadd.s32 %s235, 1
      %p239 = scmp.eq.s32.totalorder %s33, 1
      %p240 = scmp.ne.s32.totalorder %s235, %s237
      %p241 = scmp.eq.s32.totalorder %s33, 0
      %p242 = por %p240, %p241
      %p243 = scmp.ne.s32.totalorder %s235, %s237
      %p244 = scmp.eq.s32.totalorder %s38, 1
      %p245 = por %p243, %p244
      %p246 = scmp.ne.s32.totalorder %s237, %s238
      %p247 = scmp.eq.s32.totalorder %s38, 0
      %p248 = por %p246, %p247
      %p249 = scmp.ne.s32.totalorder %s237, %s238
      %p250 = scmp.eq.s32.totalorder %s39, 1
      %p251 = por %p249, %p250
      %p253 = scmp.ne.s32.totalorder %s238, %s252
      %p254 = scmp.eq.s32.totalorder %s39, 0
      %p255 = por %p253, %p254
      %s257 = sadd.s32 %s256, 1
      %p260 = scmp.eq.s32.totalorder %s33, 1
      %p261 = scmp.ne.s32.totalorder %s256, %s258
      %p262 = scmp.eq.s32.totalorder %s33, 0
      %p263 = por %p261, %p262
      %p264 = scmp.ne.s32.totalorder %s256, %s258
      %p265 = scmp.eq.s32.totalorder %s38, 1
      %p266 = por %p264, %p265
      %p267 = scmp.ne.s32.totalorder %s258, %s259
      %p268 = scmp.eq.s32.totalorder %s38, 0
      %p269 = por %p267, %p268
      %p270 = scmp.ne.s32.totalorder %s258, %s259
      %p271 = scmp.eq.s32.totalorder %s39, 1
      %p272 = por %p270, %p271
      %p274 = scmp.ne.s32.totalorder %s259, %s273
      %p275 = scmp.eq.s32.totalorder %s39, 0
      %p276 = por %p274, %p275
      %s278 = sadd.s32 %s277, 1
      %p281 = scmp.eq.s32.totalorder %s33, 1
      %p282 = scmp.ne.s32.totalorder %s277, %s279
      %p283 = scmp.eq.s32.totalorder %s33, 0
      %p284 = por %p282, %p283
      %p285 = scmp.ne.s32.totalorder %s277, %s279
      %p286 = scmp.eq.s32.totalorder %s38, 1
      %p287 = por %p285, %p286
      %p288 = scmp.ne.s32.totalorder %s279, %s280
      %p289 = scmp.eq.s32.totalorder %s38, 0
      %p290 = por %p288, %p289
      %p291 = scmp.ne.s32.totalorder %s279, %s280
      %p292 = scmp.eq.s32.totalorder %s39, 1
      %p293 = por %p291, %p292
      %p295 = scmp.ne.s32.totalorder %s280, %s294
      %p296 = scmp.eq.s32.totalorder %s39, 0
      %p297 = por %p295, %p296
      %s299 = sadd.s32 %s298, 1
      %p302 = scmp.eq.s32.totalorder %s33, 1
      %p303 = scmp.ne.s32.totalorder %s298, %s300
      %p304 = scmp.eq.s32.totalorder %s33, 0
      %p305 = por %p303, %p304
      %p306 = scmp.ne.s32.totalorder %s298, %s300
      %p307 = scmp.eq.s32.totalorder %s38, 1
      %p308 = por %p306, %p307
      %p309 = scmp.ne.s32.totalorder %s300, %s301
      %p310 = scmp.eq.s32.totalorder %s38, 0
      %p311 = por %p309, %p310
      %p312 = scmp.ne.s32.totalorder %s300, %s301
      %p313 = scmp.eq.s32.totalorder %s39, 1
      %p314 = por %p312, %p313
      %p316 = scmp.ne.s32.totalorder %s301, %s315
      %p317 = scmp.eq.s32.totalorder %s39, 0
      %p318 = por %p316, %p317
      %s320 = sadd.s32 %s319, 1
      %p323 = scmp.eq.s32.totalorder %s33, 1
      %p324 = scmp.ne.s32.totalorder %s319, %s321
      %p325 = scmp.eq.s32.totalorder %s33, 0
      %p326 = por %p324, %p325
      %p327 = scmp.ne.s32.totalorder %s319, %s321
      %p328 = scmp.eq.s32.totalorder %s38, 1
      %p329 = por %p327, %p328
      %p330 = scmp.ne.s32.totalorder %s321, %s322
      %p331 = scmp.eq.s32.totalorder %s38, 0
      %p332 = por %p330, %p331
      %p333 = scmp.ne.s32.totalorder %s321, %s322
      %p334 = scmp.eq.s32.totalorder %s39, 1
      %p335 = por %p333, %p334
      %p337 = scmp.ne.s32.totalorder %s322, %s336
      %p338 = scmp.eq.s32.totalorder %s39, 0
      %p339 = por %p337, %p338
      %s341 = sadd.s32 %s340, 1
      %p344 = scmp.eq.s32.totalorder %s33, 1
      %p345 = scmp.ne.s32.totalorder %s340, %s342
      %p346 = scmp.eq.s32.totalorder %s33, 0
      %p347 = por %p345, %p346
      %p348 = scmp.ne.s32.totalorder %s340, %s342
      %p349 = scmp.eq.s32.totalorder %s38, 1
      %p350 = por %p348, %p349
      %p351 = scmp.ne.s32.totalorder %s342, %s343
      %p352 = scmp.eq.s32.totalorder %s38, 0
      %p353 = por %p351, %p352
      %p354 = scmp.ne.s32.totalorder %s342, %s343
      %p355 = scmp.eq.s32.totalorder %s39, 1
      %p356 = por %p354, %p355
      %p358 = scmp.ne.s32.totalorder %s343, %s357
      %p359 = scmp.eq.s32.totalorder %s39, 0
      %p360 = por %p358, %p359
      %s362 = sadd.s32 %s361, 1
      %p365 = scmp.eq.s32.totalorder %s33, 1
      %p366 = scmp.ne.s32.totalorder %s361, %s363
      %p367 = scmp.eq.s32.totalorder %s33, 0
      %p368 = por %p366, %p367
      %p369 = scmp.ne.s32.totalorder %s361, %s363
      %p370 = scmp.eq.s32.totalorder %s38, 1
      %p371 = por %p369, %p370
      %p372 = scmp.ne.s32.totalorder %s363, %s364
      %p373 = scmp.eq.s32.totalorder %s38, 0
      %p374 = por %p372, %p373
      %p375 = scmp.ne.s32.totalorder %s363, %s364
      %p376 = scmp.eq.s32.totalorder %s39, 1
      %p377 = por %p375, %p376
      %p379 = scmp.ne.s32.totalorder %s364, %s378
      %p380 = scmp.eq.s32.totalorder %s39, 0
      %p381 = por %p379, %p380
      %s383 = sadd.s32 %s382, 1
      %p386 = scmp.eq.s32.totalorder %s33, 1
      %p387 = scmp.ne.s32.totalorder %s382, %s384
      %p388 = scmp.eq.s32.totalorder %s33, 0
      %p389 = por %p387, %p388
      %p390 = scmp.ne.s32.totalorder %s382, %s384
      %p391 = scmp.eq.s32.totalorder %s38, 1
      %p392 = por %p390, %p391
      %p393 = scmp.ne.s32.totalorder %s384, %s385
      %p394 = scmp.eq.s32.totalorder %s38, 0
      %p395 = por %p393, %p394
      %p396 = scmp.ne.s32.totalorder %s384, %s385
      %p397 = scmp.eq.s32.totalorder %s39, 1
      %p398 = por %p396, %p397
      %p400 = scmp.ne.s32.totalorder %s385, %s399
      %p401 = scmp.eq.s32.totalorder %s39, 0
      %p402 = por %p400, %p401
      %s403 = ssub.s32 %s33, %s40
      %p404 = scmp.eq.s32.totalorder %s403, 0
      %s406 = sadd.s32 %s405, 1
      %s407 = scalar_select %p404, %s405, %s406
      %p410 = pneg %p404
      %p411 = scmp.eq.s32.totalorder %s33, 1
      %p412 = por %p410, %p411
      %p413 = scmp.ne.s32.totalorder %s405, %s408
      %p414 = scmp.eq.s32.totalorder %s33, 0
      %p415 = por %p413, %p414
      %p416 = scmp.ne.s32.totalorder %s405, %s408
      %p417 = scmp.eq.s32.totalorder %s38, 1
      %p418 = por %p416, %p417
      %p419 = scmp.ne.s32.totalorder %s408, %s409
      %p420 = scmp.eq.s32.totalorder %s38, 0
      %p421 = por %p419, %p420
      %p422 = scmp.ne.s32.totalorder %s408, %s409
      %p423 = scmp.eq.s32.totalorder %s39, 1
      %p424 = por %p422, %p423
      %p426 = scmp.ne.s32.totalorder %s409, %s425
      %p427 = scmp.eq.s32.totalorder %s39, 0
      %p428 = por %p426, %p427
      %p429 = scmp.le.s32.totalorder 1, %s33
      %p430 = scmp.lt.s32.totalorder %s33, 3
      %p431 = pnand %p429, %p430
      %p432 = pneg %p431
      // Predicated region
      $region9: #{tpu_custom_call.1} parent=5 // pred_check
        _
      $region10: #{tpu_custom_call.1} parent=5 // pred_check_branch
        %434 = sbr.rel (%p431) target = $region12
      $region11: #{tpu_custom_call.1} parent=5 // pred_region
        %s435 = ssub.s32 %s33, 1
        // Predicated region
        $region13: #{tpu_custom_call.1} parent=11 // pred_check
          %p436 = pneg %p80
        $region14: #{tpu_custom_call.1} parent=11 // pred_check_branch
          %438 = sbr.rel (%p436) target = $region16
        $region15: #{tpu_custom_call.1} parent=11 // pred_region
          %440 = vsyncadd [#allocation6], 0
          %s441 = sshll.u32 %s1, 4
          %s442 = int_to_ptr.hbm [resolvable:$true] %s441
          %s443 = sshll.u32 [#allocation5], 4
          %s444 = int_to_ptr.vmem [resolvable:$true] %s443
          %449 = dma.hbm_to_vmem [thread:$0]  %s442, 2048, %s444, [#allocation6], 128, 128, 8
        $region16: #{tpu_custom_call.1} parent=11 // pred_fallthru
          _
        // Predicated region
        $region17: #{tpu_custom_call.1} parent=11 // pred_check
          %p450 = pneg %p101
        $region18: #{tpu_custom_call.1} parent=11 // pred_check_branch
          %452 = sbr.rel (%p450) target = $region20
        $region19: #{tpu_custom_call.1} parent=11 // pred_region
          _
        $region20: #{tpu_custom_call.1} parent=11 // pred_fallthru
          _
        // Predicated region
        $region21: #{tpu_custom_call.1} parent=11 // pred_check
          %p453 = pneg %p122
        $region22: #{tpu_custom_call.1} parent=11 // pred_check_branch
          %455 = sbr.rel (%p453) target = $region24
        $region23: #{tpu_custom_call.1} parent=11 // pred_region
          %457 = vsyncadd [#allocation6], 0
          %s458 = sshll.u32 %s3, 4
          %s459 = int_to_ptr.hbm [resolvable:$true] %s458
          %s460 = sshll.u32 [#allocation7], 4
          %s461 = int_to_ptr.vmem [resolvable:$true] %s460
          %466 = dma.hbm_to_vmem [thread:$0]  %s459, 2048, %s461, [#allocation6], 128, 128, 8
        $region24: #{tpu_custom_call.1} parent=11 // pred_fallthru
          _
        // Predicated region
        $region25: #{tpu_custom_call.1} parent=11 // pred_check
          %p467 = pneg %p143
        $region26: #{tpu_custom_call.1} parent=11 // pred_check_branch
          %469 = sbr.rel (%p467) target = $region28
        $region27: #{tpu_custom_call.1} parent=11 // pred_region
          %471 = vsyncadd [#allocation9], 0
          %s473 = sshll.u32 %s4, 4
          %s474 = int_to_ptr.hbm [resolvable:$true] %s473
          %s475 = sshll.u32 [#allocation8], 4
          %s476 = int_to_ptr.vmem [resolvable:$true] %s475
          %478 = dma.hbm_to_vmem [thread:$0]  %s474, 16, %s476, [#allocation9]
        $region28: #{tpu_custom_call.1} parent=11 // pred_fallthru
          _
        // Predicated region
        $region29: #{tpu_custom_call.1} parent=11 // pred_check
          %p479 = pneg %p164
        $region30: #{tpu_custom_call.1} parent=11 // pred_check_branch
          %481 = sbr.rel (%p479) target = $region32
        $region31: #{tpu_custom_call.1} parent=11 // pred_region
          %483 = vsyncadd [#allocation9], 0
          %s484 = sshll.u32 %s5, 4
          %s485 = int_to_ptr.hbm [resolvable:$true] %s484
          %s486 = sshll.u32 [#allocation10], 4
          %s487 = int_to_ptr.vmem [resolvable:$true] %s486
          %492 = dma.hbm_to_vmem [thread:$0]  %s485, 2048, %s487, [#allocation9], 128, 128, 8
        $region32: #{tpu_custom_call.1} parent=11 // pred_fallthru
          _
        // Predicated region
        $region33: #{tpu_custom_call.1} parent=11 // pred_check
          %p493 = pneg %p185
        $region34: #{tpu_custom_call.1} parent=11 // pred_check_branch
          %495 = sbr.rel (%p493) target = $region36
        $region35: #{tpu_custom_call.1} parent=11 // pred_region
          _
        $region36: #{tpu_custom_call.1} parent=11 // pred_fallthru
          _
        // Predicated region
        $region37: #{tpu_custom_call.1} parent=11 // pred_check
          %p496 = pneg %p206
        $region38: #{tpu_custom_call.1} parent=11 // pred_check_branch
          %498 = sbr.rel (%p496) target = $region40
        $region39: #{tpu_custom_call.1} parent=11 // pred_region
          %500 = vsyncadd [#allocation12], 0
          %s501 = sshll.u32 %s7, 4
          %s502 = int_to_ptr.hbm [resolvable:$true] %s501
          %s503 = sshll.u32 [#allocation11], 4
          %s504 = int_to_ptr.vmem [resolvable:$true] %s503
          %509 = dma.hbm_to_vmem [thread:$0]  %s502, 2048, %s504, [#allocation12], 128, 128, 8
        $region40: #{tpu_custom_call.1} parent=11 // pred_fallthru
          _
        // Predicated region
        $region41: #{tpu_custom_call.1} parent=11 // pred_check
          %p510 = pneg %p227
        $region42: #{tpu_custom_call.1} parent=11 // pred_check_branch
          %512 = sbr.rel (%p510) target = $region44
        $region43: #{tpu_custom_call.1} parent=11 // pred_region
          _
        $region44: #{tpu_custom_call.1} parent=11 // pred_fallthru
          _
        // Predicated region
        $region45: #{tpu_custom_call.1} parent=11 // pred_check
          %p513 = pneg %p248
        $region46: #{tpu_custom_call.1} parent=11 // pred_check_branch
          %515 = sbr.rel (%p513) target = $region48
        $region47: #{tpu_custom_call.1} parent=11 // pred_region
          _
        $region48: #{tpu_custom_call.1} parent=11 // pred_fallthru
          _
        // Predicated region
        $region49: #{tpu_custom_call.1} parent=11 // pred_check
          %p516 = pneg %p269
        $region50: #{tpu_custom_call.1} parent=11 // pred_check_branch
          %518 = sbr.rel (%p516) target = $region52
        $region51: #{tpu_custom_call.1} parent=11 // pred_region
          _
        $region52: #{tpu_custom_call.1} parent=11 // pred_fallthru
          _
        // Predicated region
        $region53: #{tpu_custom_call.1} parent=11 // pred_check
          %p519 = pneg %p290
        $region54: #{tpu_custom_call.1} parent=11 // pred_check_branch
          %521 = sbr.rel (%p519) target = $region56
        $region55: #{tpu_custom_call.1} parent=11 // pred_region
          %523 = vsyncadd [#allocation12], 0
          %s524 = sshll.u32 %s11, 4
          %s525 = int_to_ptr.hbm [resolvable:$true] %s524
          %s526 = sshll.u32 [#allocation13], 4
          %s527 = int_to_ptr.vmem [resolvable:$true] %s526
          %532 = dma.hbm_to_vmem [thread:$0]  %s525, 4096, %s527, [#allocation12], 256, 256, 16
        $region56: #{tpu_custom_call.1} parent=11 // pred_fallthru
          _
        // Predicated region
        $region57: #{tpu_custom_call.1} parent=11 // pred_check
          %p533 = pneg %p311
        $region58: #{tpu_custom_call.1} parent=11 // pred_check_branch
          %535 = sbr.rel (%p533) target = $region60
        $region59: #{tpu_custom_call.1} parent=11 // pred_region
          _
        $region60: #{tpu_custom_call.1} parent=11 // pred_fallthru
          _
        // Predicated region
        $region61: #{tpu_custom_call.1} parent=11 // pred_check
          %p536 = pneg %p332
        $region62: #{tpu_custom_call.1} parent=11 // pred_check_branch
          %538 = sbr.rel (%p536) target = $region64
        $region63: #{tpu_custom_call.1} parent=11 // pred_region
          %540 = vsyncadd [#allocation15], 0
          %s541 = sshll.u32 %s13, 4
          %s542 = int_to_ptr.hbm [resolvable:$true] %s541
          %s543 = sshll.u32 [#allocation14], 4
          %s544 = int_to_ptr.vmem [resolvable:$true] %s543
          %549 = dma.hbm_to_vmem [thread:$0]  %s542, 4096, %s544, [#allocation15], 128, 128, 8
        $region64: #{tpu_custom_call.1} parent=11 // pred_fallthru
          _
        // Predicated region
        $region65: #{tpu_custom_call.1} parent=11 // pred_check
          %p550 = pneg %p353
        $region66: #{tpu_custom_call.1} parent=11 // pred_check_branch
          %552 = sbr.rel (%p550) target = $region68
        $region67: #{tpu_custom_call.1} parent=11 // pred_region
          _
        $region68: #{tpu_custom_call.1} parent=11 // pred_fallthru
          _
        // Predicated region
        $region69: #{tpu_custom_call.1} parent=11 // pred_check
          %p553 = pneg %p374
        $region70: #{tpu_custom_call.1} parent=11 // pred_check_branch
          %555 = sbr.rel (%p553) target = $region72
        $region71: #{tpu_custom_call.1} parent=11 // pred_region
          _
        $region72: #{tpu_custom_call.1} parent=11 // pred_fallthru
          _
        // Predicated region
        $region73: #{tpu_custom_call.1} parent=11 // pred_check
          %p556 = pneg %p395
        $region74: #{tpu_custom_call.1} parent=11 // pred_check_branch
          %558 = sbr.rel (%p556) target = $region76
        $region75: #{tpu_custom_call.1} parent=11 // pred_region
          _
        $region76: #{tpu_custom_call.1} parent=11 // pred_fallthru
          _
      $region12: #{tpu_custom_call.1} parent=5 // pred_fallthru
        _
      %p559 = scmp.lt.s32.totalorder %s33, 2
      // Predicated region
      $region77: #{tpu_custom_call.1} parent=5 // pred_check
        %p560 = pneg %p559
      $region78: #{tpu_custom_call.1} parent=5 // pred_check_branch
        %562 = sbr.rel (%p560) target = $region80
      $region79: #{tpu_custom_call.1} parent=5 // pred_region
        // Predicated region
        $region81: #{tpu_custom_call.1} parent=79 // pred_check
          %p563 = pneg %p53
        $region82: #{tpu_custom_call.1} parent=79 // pred_check_branch
          %565 = sbr.rel (%p563) target = $region84
        $region83: #{tpu_custom_call.1} parent=79 // pred_region
          %s566 = sand.u32 %s43, 1
          %s567 = scalar_lea.sflag [#allocation3], %s566
          %s568 = sand.u32 %s43, 1
          %s569 = smul.addr %s568, 16
          %s570 = scalar_lea.vmem [#allocation2], %s569
          %572 = vsyncadd %s567, 0
          %s573 = smul.addr %s33, 2
          %s574 = smul.addr %s573, 8
          %s575 = scalar_lea.hbm %s0, %s574
          %s576 = sshll.u32 %s575, 4
          %s577 = int_to_ptr.hbm [resolvable:$true] %s576
          %s578 = sshll.u32 %s570, 4
          %s579 = int_to_ptr.vmem [resolvable:$true] %s578
          %584 = dma.hbm_to_vmem [thread:$0]  %s577, 256, %s579, %s567, 128, 128, 8
        $region84: #{tpu_custom_call.1} parent=79 // pred_fallthru
          _
      $region80: #{tpu_custom_call.1} parent=5 // pred_fallthru
        _
      %p585 = scmp.le.s32.totalorder 1, %s33
      %p586 = scmp.lt.s32.totalorder %s33, 3
      %p587 = pnand %p585, %p586
      %p588 = pneg %p587
      // Predicated region
      $region85: #{tpu_custom_call.1} parent=5 // pred_check
        _
      $region86: #{tpu_custom_call.1} parent=5 // pred_check_branch
        %590 = sbr.rel (%p587) target = $region88
      $region87: #{tpu_custom_call.1} parent=5 // pred_region
        %s591 = ssub.s32 %s33, 1
        %s592 = sand.u32 %s46, 1
        %s593 = scalar_lea.sflag [#allocation3], %s592
        %s594 = sand.u32 %s46, 1
        %s595 = smul.addr %s594, 16
        %s596 = scalar_lea.vmem [#allocation2], %s595
        // Predicated region
        $region89: #{tpu_custom_call.1} parent=87 // pred_check
          %p597 = pneg %p59
        $region90: #{tpu_custom_call.1} parent=87 // pred_check_branch
          %599 = sbr.rel (%p597) target = $region92
        $region91: #{tpu_custom_call.1} parent=87 // pred_region
          %601 = dma.done %s593, 256
        $region92: #{tpu_custom_call.1} parent=87 // pred_fallthru
          _
        // Predicated region
        $region93: #{tpu_custom_call.1} parent=87 // pred_check
          %p602 = pneg %p80
        $region94: #{tpu_custom_call.1} parent=87 // pred_check_branch
          %604 = sbr.rel (%p602) target = $region96
        $region95: #{tpu_custom_call.1} parent=87 // pred_region
          %606 = dma.done [#allocation6], 2048
        $region96: #{tpu_custom_call.1} parent=87 // pred_fallthru
          _
        // Predicated region
        $region97: #{tpu_custom_call.1} parent=87 // pred_check
          %p607 = pneg %p122
        $region98: #{tpu_custom_call.1} parent=87 // pred_check_branch
          %609 = sbr.rel (%p607) target = $region100
        $region99: #{tpu_custom_call.1} parent=87 // pred_region
          %611 = dma.done [#allocation6], 2048
        $region100: #{tpu_custom_call.1} parent=87 // pred_fallthru
          _
        // Predicated region
        $region101: #{tpu_custom_call.1} parent=87 // pred_check
          %p612 = pneg %p143
        $region102: #{tpu_custom_call.1} parent=87 // pred_check_branch
          %614 = sbr.rel (%p612) target = $region104
        $region103: #{tpu_custom_call.1} parent=87 // pred_region
          %616 = dma.done [#allocation9], 16
        $region104: #{tpu_custom_call.1} parent=87 // pred_fallthru
          _
        // Predicated region
        $region105: #{tpu_custom_call.1} parent=87 // pred_check
          %p617 = pneg %p164
        $region106: #{tpu_custom_call.1} parent=87 // pred_check_branch
          %619 = sbr.rel (%p617) target = $region108
        $region107: #{tpu_custom_call.1} parent=87 // pred_region
          %621 = dma.done [#allocation9], 2048
        $region108: #{tpu_custom_call.1} parent=87 // pred_fallthru
          _
        // Predicated region
        $region109: #{tpu_custom_call.1} parent=87 // pred_check
          %p622 = pneg %p206
        $region110: #{tpu_custom_call.1} parent=87 // pred_check_branch
          %624 = sbr.rel (%p622) target = $region112
        $region111: #{tpu_custom_call.1} parent=87 // pred_region
          %626 = dma.done [#allocation12], 2048
        $region112: #{tpu_custom_call.1} parent=87 // pred_fallthru
          _
        // Predicated region
        $region113: #{tpu_custom_call.1} parent=87 // pred_check
          %p627 = pneg %p290
        $region114: #{tpu_custom_call.1} parent=87 // pred_check_branch
          %629 = sbr.rel (%p627) target = $region116
        $region115: #{tpu_custom_call.1} parent=87 // pred_region
          %631 = dma.done [#allocation12], 4096
        $region116: #{tpu_custom_call.1} parent=87 // pred_fallthru
          _
        // Predicated region
        $region117: #{tpu_custom_call.1} parent=87 // pred_check
          %p632 = pneg %p332
        $region118: #{tpu_custom_call.1} parent=87 // pred_check_branch
          %634 = sbr.rel (%p632) target = $region120
        $region119: #{tpu_custom_call.1} parent=87 // pred_region
          %636 = dma.done [#allocation15], 4096
        $region120: #{tpu_custom_call.1} parent=87 // pred_fallthru
          _
        %s637 = sand.u32 %s46, 1
        %s638 = scalar_lea.sflag [#allocation3], %s637
        %s639 = sand.u32 %s46, 1
        %s640 = smul.addr %s639, 16
        %s641 = scalar_lea.vmem [#allocation2], %s640
        %p642 = pneg %p59
        %p643 = pneg %p56
        %p644 = pneg %p80
        %p645 = pneg %p77
        %p646 = pneg %p101
        %p647 = pneg %p98
        %p648 = pneg %p122
        %p649 = pneg %p119
        %p650 = pneg %p143
        %p651 = pneg %p140
        %p652 = pneg %p164
        %p653 = pneg %p161
        %p654 = pneg %p185
        %p655 = pneg %p182
        %p656 = pneg %p206
        %p657 = pneg %p203
        %p658 = pneg %p227
        %p659 = pneg %p224
        %p660 = pneg %p248
        %p661 = pneg %p245
        %p662 = pneg %p269
        %p663 = pneg %p266
        %p664 = pneg %p290
        %p665 = pneg %p287
        %p666 = pneg %p311
        %p667 = pneg %p308
        %p668 = pneg %p332
        %p669 = pneg %p329
        %p670 = pneg %p353
        %p671 = pneg %p350
        %p672 = pneg %p374
        %p673 = pneg %p371
        %p674 = pneg %p395
        %p675 = pneg %p392
        %p676 = pneg %p421
        %p677 = pneg %p418
        %s678 = sand.u32 %s408, 1
        %s679 = scalar_lea.sflag [#allocation4], %s678
        %s680 = sand.u32 %s408, 1
        %s681 = smul.addr %s680, 16
        %s682 = scalar_lea.vmem [#allocation16], %s681
        %v683 = vld [vmem:[%s596] sm:$0xff]
        %v684 = vld [vmem:[%s596 + $0x8] sm:$0xff]
        %v685 = vld [vmem:[#allocation5] sm:$0xff]
        %v686 = vld [vmem:[#allocation5 + $0x8] sm:$0xff]
        %v687 = vld [vmem:[#allocation5 + $0x10] sm:$0xff]
        %v688 = vld [vmem:[#allocation5 + $0x18] sm:$0xff]
        %v689 = vld [vmem:[#allocation5 + $0x20] sm:$0xff]
        %v690 = vld [vmem:[#allocation5 + $0x28] sm:$0xff]
        %v691 = vld [vmem:[#allocation5 + $0x30] sm:$0xff]
        %v692 = vld [vmem:[#allocation5 + $0x38] sm:$0xff]
        %v693 = vld [vmem:[#allocation5 + $0x40] sm:$0xff]
        %v694 = vld [vmem:[#allocation5 + $0x48] sm:$0xff]
        %v695 = vld [vmem:[#allocation5 + $0x50] sm:$0xff]
        %v696 = vld [vmem:[#allocation5 + $0x58] sm:$0xff]
        %v697 = vld [vmem:[#allocation5 + $0x60] sm:$0xff]
        %v698 = vld [vmem:[#allocation5 + $0x68] sm:$0xff]
        %v699 = vld [vmem:[#allocation5 + $0x70] sm:$0xff]
        %v700 = vld [vmem:[#allocation5 + $0x78] sm:$0xff]
        %v701 = vld [vmem:[%s2] sm:$0x1]
        %v703 = vperm.slane %v701, 0
        %705 = vmatpush.msra.mxu0 %v700
        %706 = vmatpush.msra.mxu0 %v699
        %707 = vmatpush.msra.mxu0 %v698
        %708 = vmatpush.msra.mxu0 %v697
        %709 = vmatpush.msra.mxu0 %v696
        %710 = vmatpush.msra.mxu0 %v695
        %711 = vmatpush.msra.mxu0 %v694
        %712 = vmatpush.msra.mxu0 %v693
        %713 = vmatpush.msra.mxu0 %v692
        %714 = vmatpush.msra.mxu0 %v691
        %715 = vmatpush.msra.mxu0 %v690
        %716 = vmatpush.msra.mxu0 %v689
        %717 = vmatpush.msra.mxu0 %v688
        %718 = vmatpush.msra.mxu0 %v687
        %719 = vmatpush.msra.mxu0 %v686
        %720 = vmatpush.msra.mxu0 %v685
        %721 = vmatmul.f32.gmra.mxu0 %v683
        %v722 = vpop.f32.mrf.mxu0
        %v723 = vadd.f32 %v703, %v722
        %724 = vmatmul.f32.gmra.mxu0 %v684
        %v725 = vpop.f32.mrf.mxu0
        %v726 = vadd.f32 %v703, %v725
        %727 = vdwg.mxu0
        %v728 = vld [vmem:[#allocation7] sm:$0xff]
        %v729 = vld [vmem:[#allocation7 + $0x8] sm:$0xff]
        %v730 = vld [vmem:[#allocation7 + $0x10] sm:$0xff]
        %v731 = vld [vmem:[#allocation7 + $0x18] sm:$0xff]
        %v732 = vld [vmem:[#allocation7 + $0x20] sm:$0xff]
        %v733 = vld [vmem:[#allocation7 + $0x28] sm:$0xff]
        %v734 = vld [vmem:[#allocation7 + $0x30] sm:$0xff]
        %v735 = vld [vmem:[#allocation7 + $0x38] sm:$0xff]
        %v736 = vld [vmem:[#allocation7 + $0x40] sm:$0xff]
        %v737 = vld [vmem:[#allocation7 + $0x48] sm:$0xff]
        %v738 = vld [vmem:[#allocation7 + $0x50] sm:$0xff]
        %v739 = vld [vmem:[#allocation7 + $0x58] sm:$0xff]
        %v740 = vld [vmem:[#allocation7 + $0x60] sm:$0xff]
        %v741 = vld [vmem:[#allocation7 + $0x68] sm:$0xff]
        %v742 = vld [vmem:[#allocation7 + $0x70] sm:$0xff]
        %v743 = vld [vmem:[#allocation7 + $0x78] sm:$0xff]
        %v744 = vld [vmem:[#allocation8] sm:$0x1]
        %v746 = vperm.slane %v744, 0
        %748 = vmatpush.msra.mxu0 %v743
        %749 = vmatpush.msra.mxu0 %v742
        %750 = vmatpush.msra.mxu0 %v741
        %751 = vmatpush.msra.mxu0 %v740
        %752 = vmatpush.msra.mxu0 %v739
        %753 = vmatpush.msra.mxu0 %v738
        %754 = vmatpush.msra.mxu0 %v737
        %755 = vmatpush.msra.mxu0 %v736
        %756 = vmatpush.msra.mxu0 %v735
        %757 = vmatpush.msra.mxu0 %v734
        %758 = vmatpush.msra.mxu0 %v733
        %759 = vmatpush.msra.mxu0 %v732
        %760 = vmatpush.msra.mxu0 %v731
        %761 = vmatpush.msra.mxu0 %v730
        %762 = vmatpush.msra.mxu0 %v729
        %763 = vmatpush.msra.mxu0 %v728
        %764 = vmatmul.f32.gmra.mxu0 %v683
        %v765 = vpop.f32.mrf.mxu0
        %v766 = vadd.f32 %v746, %v765
        %767 = vmatmul.f32.gmra.mxu0 %v684
        %v768 = vpop.f32.mrf.mxu0
        %v769 = vadd.f32 %v746, %v768
        %770 = vdwg.mxu0
        %v771 = vld [vmem:[#allocation10] sm:$0xff]
        %v772 = vld [vmem:[#allocation10 + $0x8] sm:$0xff]
        %v773 = vld [vmem:[#allocation10 + $0x10] sm:$0xff]
        %v774 = vld [vmem:[#allocation10 + $0x18] sm:$0xff]
        %v775 = vld [vmem:[#allocation10 + $0x20] sm:$0xff]
        %v776 = vld [vmem:[#allocation10 + $0x28] sm:$0xff]
        %v777 = vld [vmem:[#allocation10 + $0x30] sm:$0xff]
        %v778 = vld [vmem:[#allocation10 + $0x38] sm:$0xff]
        %v779 = vld [vmem:[#allocation10 + $0x40] sm:$0xff]
        %v780 = vld [vmem:[#allocation10 + $0x48] sm:$0xff]
        %v781 = vld [vmem:[#allocation10 + $0x50] sm:$0xff]
        %v782 = vld [vmem:[#allocation10 + $0x58] sm:$0xff]
        %v783 = vld [vmem:[#allocation10 + $0x60] sm:$0xff]
        %v784 = vld [vmem:[#allocation10 + $0x68] sm:$0xff]
        %v785 = vld [vmem:[#allocation10 + $0x70] sm:$0xff]
        %v786 = vld [vmem:[#allocation10 + $0x78] sm:$0xff]
        %v787 = vld [vmem:[%s6] sm:$0x1]
        %v789 = vperm.slane %v787, 0
        %791 = vmatpush.msra.mxu0 %v786
        %792 = vmatpush.msra.mxu0 %v785
        %793 = vmatpush.msra.mxu0 %v784
        %794 = vmatpush.msra.mxu0 %v783
        %795 = vmatpush.msra.mxu0 %v782
        %796 = vmatpush.msra.mxu0 %v781
        %797 = vmatpush.msra.mxu0 %v780
        %798 = vmatpush.msra.mxu0 %v779
        %799 = vmatpush.msra.mxu0 %v778
        %800 = vmatpush.msra.mxu0 %v777
        %801 = vmatpush.msra.mxu0 %v776
        %802 = vmatpush.msra.mxu0 %v775
        %803 = vmatpush.msra.mxu0 %v774
        %804 = vmatpush.msra.mxu0 %v773
        %805 = vmatpush.msra.mxu0 %v772
        %806 = vmatpush.msra.mxu0 %v771
        %807 = vmatmul.f32.gmra.mxu0 %v683
        %v808 = vpop.f32.mrf.mxu0
        %v809 = vadd.f32 %v789, %v808
        %810 = vmatmul.f32.gmra.mxu0 %v684
        %v811 = vpop.f32.mrf.mxu0
        %v812 = vadd.f32 %v789, %v811
        %813 = vdwg.mxu0
        %vm814 = vcmask 261120
        %v816 = vsel %vm814, %v723, 0
        %v819 = vsel %vm814, %v726, 0
        %v822 = vsel %vm814, %v766, 0
        %v825 = vsel %vm814, %v769, 0
        %827 = vmatpush.xpose.msra.mxu0 0.0
        %828 = vmatpush.xpose.msra.mxu0 0.0
        %829 = vmatpush.xpose.msra.mxu0 0.0
        %830 = vmatpush.xpose.msra.mxu0 0.0
        %831 = vmatpush.xpose.msra.mxu0 0.0
        %832 = vmatpush.xpose.msra.mxu0 0.0
        %833 = vmatpush.xpose.msra.mxu0 0.0
        %834 = vmatpush.xpose.msra.mxu0 0.0
        %835 = vmatpush.xpose.msra.mxu0 0.0
        %836 = vmatpush.xpose.msra.mxu0 0.0
        %837 = vmatpush.xpose.msra.mxu0 0.0
        %838 = vmatpush.xpose.msra.mxu0 0.0
        %839 = vmatpush.xpose.msra.mxu0 0.0
        %840 = vmatpush.xpose.msra.mxu0 0.0
        %841 = vmatpush.xpose.msra.mxu0 %v825
        %842 = vmatpush.xpose.msra.mxu0 %v822
        %843 = vmatmul.f32.gmra.mxu0 %v816
        %v844 = vpop.f32.mrf.mxu0
        %v845 = vadd.f32 0.0, %v844
        %846 = vmatmul.f32.gmra.mxu0 %v819
        %v847 = vpop.f32.mrf.mxu0
        %v848 = vadd.f32 0.0, %v847
        %849 = vdwg.mxu0
        %v850 = vmul.f32 %v845, 0.17677669
        %v851 = vmul.f32 %v848, 0.17677669
        %vm852 = vcmask 130048
        %v853 = vsel %vm852, %v850, -inf
        %854 = vmax.xlane.f32.xlu0 %v853
        %v855 = vpop.xlane.xlu0 %854
        %v856 = vsel %vm852, %v851, -inf
        %857 = vmax.xlane.f32.xlu0 %v856
        %v858 = vpop.xlane.xlu0 %857
        %v859 = vsub.f32 %v850, %v855
        %v860 = vsub.f32 %v851, %v858
        %v861 = vmul.f32 %v859, 1.442695
        %v862 = vpow.pop %v861
        %v863 = vmul.f32 %v860, 1.442695
        %v864 = vpow.pop %v863
        %v865 = vsel %vm852, %v862, 0.0
        %866 = vadd.xlane.f32.xlu0 %v865
        %v867 = vpop.xlane.xlu0 %866
        %v868 = vsel %vm852, %v864, 0.0
        %869 = vadd.xlane.f32.xlu0 %v868
        %v870 = vpop.xlane.xlu0 %869
        %v871 = vrcp.pop %v867
        %v872 = vmul.f32 %v867, %v871
        %v873 = vsub.f32 1.0, %v872
        %v874 = vmul.f32 %v871, %v873
        %v875 = vadd.f32 %v871, %v874
        %vm876 = vweird.f32 %v867
        %vm877 = vweird.f32 %v871
        %vm878 = vmor %vm876, %vm877
        %v879 = vsel %vm878, %v871, %v875
        %v880 = vand.u32 2147483647, %v867
        %vm881 = vcmp.eq.f32.partialorder %v880, 8.507059e+37
        %v882 = vand.u32 %v867, 2147483648
        %v883 = vor.u32 1.1754944e-38, %v882
        %v884 = vsel %vm881, %v883, %v879
        %v885 = vmul.f32 %v862, %v884
        %v886 = vrcp.pop %v870
        %v887 = vmul.f32 %v870, %v886
        %v888 = vsub.f32 1.0, %v887
        %v889 = vmul.f32 %v886, %v888
        %v890 = vadd.f32 %v886, %v889
        %vm891 = vweird.f32 %v870
        %vm892 = vweird.f32 %v886
        %vm893 = vmor %vm891, %vm892
        %v894 = vsel %vm893, %v886, %v890
        %v895 = vand.u32 2147483647, %v870
        %vm896 = vcmp.eq.f32.partialorder %v895, 8.507059e+37
        %v897 = vand.u32 %v870, 2147483648
        %v898 = vor.u32 1.1754944e-38, %v897
        %v899 = vsel %vm896, %v898, %v894
        %v900 = vmul.f32 %v864, %v899
        %v902 = vsel %vm852, %v885, 0
        %v905 = vsel %vm852, %v900, 0
        %907 = vmatpush.msra.mxu0 0.0
        %908 = vmatpush.msra.mxu0 0.0
        %909 = vmatpush.msra.mxu0 0.0
        %910 = vmatpush.msra.mxu0 0.0
        %911 = vmatpush.msra.mxu0 0.0
        %912 = vmatpush.msra.mxu0 0.0
        %913 = vmatpush.msra.mxu0 0.0
        %914 = vmatpush.msra.mxu0 0.0
        %915 = vmatpush.msra.mxu0 0.0
        %916 = vmatpush.msra.mxu0 0.0
        %917 = vmatpush.msra.mxu0 0.0
        %918 = vmatpush.msra.mxu0 0.0
        %919 = vmatpush.msra.mxu0 0.0
        %920 = vmatpush.msra.mxu0 0.0
        %921 = vmatpush.msra.mxu0 %v812
        %922 = vmatpush.msra.mxu0 %v809
        %923 = vmatmul.f32.gmra.mxu0 %v902
        %v924 = vpop.f32.mrf.mxu0
        %v925 = vadd.f32 0.0, %v924
        %926 = vmatmul.f32.gmra.mxu0 %v905
        %v927 = vpop.f32.mrf.mxu0
        %v928 = vadd.f32 0.0, %v927
        %929 = vdwg.mxu0
        %v930 = vld [vmem:[#allocation11] sm:$0xff]
        %v931 = vld [vmem:[#allocation11 + $0x8] sm:$0xff]
        %v932 = vld [vmem:[#allocation11 + $0x10] sm:$0xff]
        %v933 = vld [vmem:[#allocation11 + $0x18] sm:$0xff]
        %934 = vrot.lane.b32.xlu0 %v723, 96
        %v935 = vpop.permute.xlu0 %934
        %936 = vrot.lane.b32.xlu0 %v726, 96
        %v937 = vpop.permute.xlu0 %936
        %938 = vrot.lane.b32.xlu0 %v766, 96
        %v939 = vpop.permute.xlu0 %938
        %940 = vrot.lane.b32.xlu0 %v769, 96
        %v941 = vpop.permute.xlu0 %940
        %v942 = vsel %vm814, %v935, 0
        %v944 = vsel %vm814, %v937, 0
        %v946 = vsel %vm814, %v939, 0
        %v948 = vsel %vm814, %v941, 0
        %950 = vmatpush.xpose.msra.mxu0 0.0
        %951 = vmatpush.xpose.msra.mxu0 0.0
        %952 = vmatpush.xpose.msra.mxu0 0.0
        %953 = vmatpush.xpose.msra.mxu0 0.0
        %954 = vmatpush.xpose.msra.mxu0 0.0
        %955 = vmatpush.xpose.msra.mxu0 0.0
        %956 = vmatpush.xpose.msra.mxu0 0.0
        %957 = vmatpush.xpose.msra.mxu0 0.0
        %958 = vmatpush.xpose.msra.mxu0 0.0
        %959 = vmatpush.xpose.msra.mxu0 0.0
        %960 = vmatpush.xpose.msra.mxu0 0.0
        %961 = vmatpush.xpose.msra.mxu0 0.0
        %962 = vmatpush.xpose.msra.mxu0 0.0
        %963 = vmatpush.xpose.msra.mxu0 0.0
        %964 = vmatpush.xpose.msra.mxu0 %v948
        %965 = vmatpush.xpose.msra.mxu0 %v946
        %966 = vmatmul.f32.gmra.mxu0 %v942
        %v967 = vpop.f32.mrf.mxu0
        %v968 = vadd.f32 0.0, %v967
        %969 = vmatmul.f32.gmra.mxu0 %v944
        %v970 = vpop.f32.mrf.mxu0
        %v971 = vadd.f32 0.0, %v970
        %972 = vdwg.mxu0
        %v973 = vmul.f32 %v968, 0.17677669
        %v974 = vmul.f32 %v971, 0.17677669
        %v975 = vsel %vm852, %v973, -inf
        %976 = vmax.xlane.f32.xlu0 %v975
        %v977 = vpop.xlane.xlu0 %976
        %v978 = vsel %vm852, %v974, -inf
        %979 = vmax.xlane.f32.xlu0 %v978
        %v980 = vpop.xlane.xlu0 %979
        %v981 = vsub.f32 %v973, %v977
        %v982 = vsub.f32 %v974, %v980
        %v983 = vmul.f32 %v981, 1.442695
        %v984 = vpow.pop %v983
        %v985 = vmul.f32 %v982, 1.442695
        %v986 = vpow.pop %v985
        %v987 = vsel %vm852, %v984, 0.0
        %988 = vadd.xlane.f32.xlu0 %v987
        %v989 = vpop.xlane.xlu0 %988
        %v990 = vsel %vm852, %v986, 0.0
        %991 = vadd.xlane.f32.xlu0 %v990
        %v992 = vpop.xlane.xlu0 %991
        %v993 = vrcp.pop %v989
        %v994 = vmul.f32 %v989, %v993
        %v995 = vsub.f32 1.0, %v994
        %v996 = vmul.f32 %v993, %v995
        %v997 = vadd.f32 %v993, %v996
        %vm998 = vweird.f32 %v989
        %vm999 = vweird.f32 %v993
        %vm1000 = vmor %vm998, %vm999
        %v1001 = vsel %vm1000, %v993, %v997
        %v1002 = vand.u32 2147483647, %v989
        %vm1003 = vcmp.eq.f32.partialorder %v1002, 8.507059e+37
        %v1004 = vand.u32 %v989, 2147483648
        %v1005 = vor.u32 1.1754944e-38, %v1004
        %v1006 = vsel %vm1003, %v1005, %v1001
        %v1007 = vmul.f32 %v984, %v1006
        %v1008 = vrcp.pop %v992
        %v1009 = vmul.f32 %v992, %v1008
        %v1010 = vsub.f32 1.0, %v1009
        %v1011 = vmul.f32 %v1008, %v1010
        %v1012 = vadd.f32 %v1008, %v1011
        %vm1013 = vweird.f32 %v992
        %vm1014 = vweird.f32 %v1008
        %vm1015 = vmor %vm1013, %vm1014
        %v1016 = vsel %vm1015, %v1008, %v1012
        %v1017 = vand.u32 2147483647, %v992
        %vm1018 = vcmp.eq.f32.partialorder %v1017, 8.507059e+37
        %v1019 = vand.u32 %v992, 2147483648
        %v1020 = vor.u32 1.1754944e-38, %v1019
        %v1021 = vsel %vm1018, %v1020, %v1016
        %v1022 = vmul.f32 %v986, %v1021
        %1025 = vrot.lane.b32.xlu0 %v809, 96
        %v1026 = vpop.permute.xlu0 %1025
        %1027 = vrot.lane.b32.xlu0 %v812, 96
        %v1028 = vpop.permute.xlu0 %1027
        %v1032 = vsel %vm852, %v1007, 0
        %v1035 = vsel %vm852, %v1022, 0
        %1037 = vmatpush.msra.mxu0 0.0
        %1038 = vmatpush.msra.mxu0 0.0
        %1039 = vmatpush.msra.mxu0 0.0
        %1040 = vmatpush.msra.mxu0 0.0
        %1041 = vmatpush.msra.mxu0 0.0
        %1042 = vmatpush.msra.mxu0 0.0
        %1043 = vmatpush.msra.mxu0 0.0
        %1044 = vmatpush.msra.mxu0 0.0
        %1045 = vmatpush.msra.mxu0 0.0
        %1046 = vmatpush.msra.mxu0 0.0
        %1047 = vmatpush.msra.mxu0 0.0
        %1048 = vmatpush.msra.mxu0 0.0
        %1049 = vmatpush.msra.mxu0 0.0
        %1050 = vmatpush.msra.mxu0 0.0
        %1051 = vmatpush.msra.mxu0 %v1028
        %1052 = vmatpush.msra.mxu0 %v1026
        %1053 = vmatmul.f32.gmra.mxu0 %v1032
        %v1054 = vpop.f32.mrf.mxu0
        %v1055 = vadd.f32 0.0, %v1054
        %1056 = vmatmul.f32.gmra.mxu0 %v1035
        %v1057 = vpop.f32.mrf.mxu0
        %v1058 = vadd.f32 0.0, %v1057
        %1059 = vdwg.mxu0
        %v1060 = vld [vmem:[#allocation11 + $0x20] sm:$0xff]
        %v1061 = vld [vmem:[#allocation11 + $0x28] sm:$0xff]
        %v1062 = vld [vmem:[#allocation11 + $0x30] sm:$0xff]
        %v1063 = vld [vmem:[#allocation11 + $0x38] sm:$0xff]
        %v1065 = vsel %vm814, %v1055, 0
        %v1068 = vsel %vm814, %v1058, 0
        %1070 = vmatpush.msra.mxu0 0.0
        %1071 = vmatpush.msra.mxu0 0.0
        %1072 = vmatpush.msra.mxu0 0.0
        %1073 = vmatpush.msra.mxu0 0.0
        %1074 = vmatpush.msra.mxu0 0.0
        %1075 = vmatpush.msra.mxu0 0.0
        %1076 = vmatpush.msra.mxu0 0.0
        %1077 = vmatpush.msra.mxu0 0.0
        %1078 = vmatpush.msra.mxu0 0.0
        %1079 = vmatpush.msra.mxu0 0.0
        %1080 = vmatpush.msra.mxu0 0.0
        %1081 = vmatpush.msra.mxu0 0.0
        %1082 = vmatpush.msra.mxu0 %v1063
        %1083 = vmatpush.msra.mxu0 %v1062
        %1084 = vmatpush.msra.mxu0 %v1061
        %1085 = vmatpush.msra.mxu0 %v1060
        %1086 = vmatmul.f32.gmra.mxu0 %v1065
        %v1087 = vpop.f32.mrf.mxu0
        %v1088 = vadd.f32 0.0, %v1087
        %1089 = vmatmul.f32.gmra.mxu0 %v1068
        %v1090 = vpop.f32.mrf.mxu0
        %v1091 = vadd.f32 0.0, %v1090
        %1092 = vdwg.mxu0
        %v1094 = vsel %vm814, %v925, 0
        %v1097 = vsel %vm814, %v928, 0
        %1099 = vmatpush.msra.mxu0 0.0
        %1100 = vmatpush.msra.mxu0 0.0
        %1101 = vmatpush.msra.mxu0 0.0
        %1102 = vmatpush.msra.mxu0 0.0
        %1103 = vmatpush.msra.mxu0 0.0
        %1104 = vmatpush.msra.mxu0 0.0
        %1105 = vmatpush.msra.mxu0 0.0
        %1106 = vmatpush.msra.mxu0 0.0
        %1107 = vmatpush.msra.mxu0 0.0
        %1108 = vmatpush.msra.mxu0 0.0
        %1109 = vmatpush.msra.mxu0 0.0
        %1110 = vmatpush.msra.mxu0 0.0
        %1111 = vmatpush.msra.mxu0 %v933
        %1112 = vmatpush.msra.mxu0 %v932
        %1113 = vmatpush.msra.mxu0 %v931
        %1114 = vmatpush.msra.mxu0 %v930
        %1115 = vmatmul.f32.gmra.mxu0 %v1094
        %v1116 = vpop.f32.mrf.mxu0
        %v1117 = vadd.f32 %v1088, %v1116
        %1118 = vmatmul.f32.gmra.mxu0 %v1097
        %v1119 = vpop.f32.mrf.mxu0
        %v1120 = vadd.f32 %v1091, %v1119
        %1121 = vdwg.mxu0
        %1122 = vrot.lane.b32.xlu0 %v723, 64
        %v1123 = vpop.permute.xlu0 %1122
        %1124 = vrot.lane.b32.xlu0 %v726, 64
        %v1125 = vpop.permute.xlu0 %1124
        %1126 = vrot.lane.b32.xlu0 %v766, 64
        %v1127 = vpop.permute.xlu0 %1126
        %1128 = vrot.lane.b32.xlu0 %v769, 64
        %v1129 = vpop.permute.xlu0 %1128
        %v1130 = vsel %vm814, %v1123, 0
        %v1132 = vsel %vm814, %v1125, 0
        %v1134 = vsel %vm814, %v1127, 0
        %v1136 = vsel %vm814, %v1129, 0
        %1138 = vmatpush.xpose.msra.mxu0 0.0
        %1139 = vmatpush.xpose.msra.mxu0 0.0
        %1140 = vmatpush.xpose.msra.mxu0 0.0
        %1141 = vmatpush.xpose.msra.mxu0 0.0
        %1142 = vmatpush.xpose.msra.mxu0 0.0
        %1143 = vmatpush.xpose.msra.mxu0 0.0
        %1144 = vmatpush.xpose.msra.mxu0 0.0
        %1145 = vmatpush.xpose.msra.mxu0 0.0
        %1146 = vmatpush.xpose.msra.mxu0 0.0
        %1147 = vmatpush.xpose.msra.mxu0 0.0
        %1148 = vmatpush.xpose.msra.mxu0 0.0
        %1149 = vmatpush.xpose.msra.mxu0 0.0
        %1150 = vmatpush.xpose.msra.mxu0 0.0
        %1151 = vmatpush.xpose.msra.mxu0 0.0
        %1152 = vmatpush.xpose.msra.mxu0 %v1136
        %1153 = vmatpush.xpose.msra.mxu0 %v1134
        %1154 = vmatmul.f32.gmra.mxu0 %v1130
        %v1155 = vpop.f32.mrf.mxu0
        %v1156 = vadd.f32 0.0, %v1155
        %1157 = vmatmul.f32.gmra.mxu0 %v1132
        %v1158 = vpop.f32.mrf.mxu0
        %v1159 = vadd.f32 0.0, %v1158
        %1160 = vdwg.mxu0
        %v1161 = vmul.f32 %v1156, 0.17677669
        %v1162 = vmul.f32 %v1159, 0.17677669
        %v1163 = vsel %vm852, %v1161, -inf
        %1164 = vmax.xlane.f32.xlu0 %v1163
        %v1165 = vpop.xlane.xlu0 %1164
        %v1166 = vsel %vm852, %v1162, -inf
        %1167 = vmax.xlane.f32.xlu0 %v1166
        %v1168 = vpop.xlane.xlu0 %1167
        %v1169 = vsub.f32 %v1161, %v1165
        %v1170 = vsub.f32 %v1162, %v1168
        %v1171 = vmul.f32 %v1169, 1.442695
        %v1172 = vpow.pop %v1171
        %v1173 = vmul.f32 %v1170, 1.442695
        %v1174 = vpow.pop %v1173
        %v1175 = vsel %vm852, %v1172, 0.0
        %1176 = vadd.xlane.f32.xlu0 %v1175
        %v1177 = vpop.xlane.xlu0 %1176
        %v1178 = vsel %vm852, %v1174, 0.0
        %1179 = vadd.xlane.f32.xlu0 %v1178
        %v1180 = vpop.xlane.xlu0 %1179
        %v1181 = vrcp.pop %v1177
        %v1182 = vmul.f32 %v1177, %v1181
        %v1183 = vsub.f32 1.0, %v1182
        %v1184 = vmul.f32 %v1181, %v1183
        %v1185 = vadd.f32 %v1181, %v1184
        %vm1186 = vweird.f32 %v1177
        %vm1187 = vweird.f32 %v1181
        %vm1188 = vmor %vm1186, %vm1187
        %v1189 = vsel %vm1188, %v1181, %v1185
        %v1190 = vand.u32 2147483647, %v1177
        %vm1191 = vcmp.eq.f32.partialorder %v1190, 8.507059e+37
        %v1192 = vand.u32 %v1177, 2147483648
        %v1193 = vor.u32 1.1754944e-38, %v1192
        %v1194 = vsel %vm1191, %v1193, %v1189
        %v1195 = vmul.f32 %v1172, %v1194
        %v1196 = vrcp.pop %v1180
        %v1197 = vmul.f32 %v1180, %v1196
        %v1198 = vsub.f32 1.0, %v1197
        %v1199 = vmul.f32 %v1196, %v1198
        %v1200 = vadd.f32 %v1196, %v1199
        %vm1201 = vweird.f32 %v1180
        %vm1202 = vweird.f32 %v1196
        %vm1203 = vmor %vm1201, %vm1202
        %v1204 = vsel %vm1203, %v1196, %v1200
        %v1205 = vand.u32 2147483647, %v1180
        %vm1206 = vcmp.eq.f32.partialorder %v1205, 8.507059e+37
        %v1207 = vand.u32 %v1180, 2147483648
        %v1208 = vor.u32 1.1754944e-38, %v1207
        %v1209 = vsel %vm1206, %v1208, %v1204
        %v1210 = vmul.f32 %v1174, %v1209
        %1211 = vrot.lane.b32.xlu0 %v809, 64
        %v1212 = vpop.permute.xlu0 %1211
        %1213 = vrot.lane.b32.xlu0 %v812, 64
        %v1214 = vpop.permute.xlu0 %1213
        %v1218 = vsel %vm852, %v1195, 0
        %v1221 = vsel %vm852, %v1210, 0
        %1223 = vmatpush.msra.mxu0 0.0
        %1224 = vmatpush.msra.mxu0 0.0
        %1225 = vmatpush.msra.mxu0 0.0
        %1226 = vmatpush.msra.mxu0 0.0
        %1227 = vmatpush.msra.mxu0 0.0
        %1228 = vmatpush.msra.mxu0 0.0
        %1229 = vmatpush.msra.mxu0 0.0
        %1230 = vmatpush.msra.mxu0 0.0
        %1231 = vmatpush.msra.mxu0 0.0
        %1232 = vmatpush.msra.mxu0 0.0
        %1233 = vmatpush.msra.mxu0 0.0
        %1234 = vmatpush.msra.mxu0 0.0
        %1235 = vmatpush.msra.mxu0 0.0
        %1236 = vmatpush.msra.mxu0 0.0
        %1237 = vmatpush.msra.mxu0 %v1214
        %1238 = vmatpush.msra.mxu0 %v1212
        %1239 = vmatmul.f32.gmra.mxu0 %v1218
        %v1240 = vpop.f32.mrf.mxu0
        %v1241 = vadd.f32 0.0, %v1240
        %1242 = vmatmul.f32.gmra.mxu0 %v1221
        %v1243 = vpop.f32.mrf.mxu0
        %v1244 = vadd.f32 0.0, %v1243
        %1245 = vdwg.mxu0
        %v1246 = vld [vmem:[#allocation11 + $0x40] sm:$0xff]
        %v1247 = vld [vmem:[#allocation11 + $0x48] sm:$0xff]
        %v1248 = vld [vmem:[#allocation11 + $0x50] sm:$0xff]
        %v1249 = vld [vmem:[#allocation11 + $0x58] sm:$0xff]
        %v1251 = vsel %vm814, %v1241, 0
        %v1254 = vsel %vm814, %v1244, 0
        %1256 = vmatpush.msra.mxu0 0.0
        %1257 = vmatpush.msra.mxu0 0.0
        %1258 = vmatpush.msra.mxu0 0.0
        %1259 = vmatpush.msra.mxu0 0.0
        %1260 = vmatpush.msra.mxu0 0.0
        %1261 = vmatpush.msra.mxu0 0.0
        %1262 = vmatpush.msra.mxu0 0.0
        %1263 = vmatpush.msra.mxu0 0.0
        %1264 = vmatpush.msra.mxu0 0.0
        %1265 = vmatpush.msra.mxu0 0.0
        %1266 = vmatpush.msra.mxu0 0.0
        %1267 = vmatpush.msra.mxu0 0.0
        %1268 = vmatpush.msra.mxu0 %v1249
        %1269 = vmatpush.msra.mxu0 %v1248
        %1270 = vmatpush.msra.mxu0 %v1247
        %1271 = vmatpush.msra.mxu0 %v1246
        %1272 = vmatmul.f32.gmra.mxu0 %v1251
        %v1273 = vpop.f32.mrf.mxu0
        %v1274 = vadd.f32 0.0, %v1273
        %1275 = vmatmul.f32.gmra.mxu0 %v1254
        %v1276 = vpop.f32.mrf.mxu0
        %v1277 = vadd.f32 0.0, %v1276
        %1278 = vdwg.mxu0
        %v1279 = vadd.f32 %v1117, %v1274
        %v1280 = vadd.f32 %v1120, %v1277
        %1281 = vrot.lane.b32.xlu0 %v723, 32
        %v1282 = vpop.permute.xlu0 %1281
        %1283 = vrot.lane.b32.xlu0 %v726, 32
        %v1284 = vpop.permute.xlu0 %1283
        %1285 = vrot.lane.b32.xlu0 %v766, 32
        %v1286 = vpop.permute.xlu0 %1285
        %1287 = vrot.lane.b32.xlu0 %v769, 32
        %v1288 = vpop.permute.xlu0 %1287
        %v1289 = vsel %vm814, %v1282, 0
        %v1291 = vsel %vm814, %v1284, 0
        %v1293 = vsel %vm814, %v1286, 0
        %v1295 = vsel %vm814, %v1288, 0
        %1297 = vmatpush.xpose.msra.mxu0 0.0
        %1298 = vmatpush.xpose.msra.mxu0 0.0
        %1299 = vmatpush.xpose.msra.mxu0 0.0
        %1300 = vmatpush.xpose.msra.mxu0 0.0
        %1301 = vmatpush.xpose.msra.mxu0 0.0
        %1302 = vmatpush.xpose.msra.mxu0 0.0
        %1303 = vmatpush.xpose.msra.mxu0 0.0
        %1304 = vmatpush.xpose.msra.mxu0 0.0
        %1305 = vmatpush.xpose.msra.mxu0 0.0
        %1306 = vmatpush.xpose.msra.mxu0 0.0
        %1307 = vmatpush.xpose.msra.mxu0 0.0
        %1308 = vmatpush.xpose.msra.mxu0 0.0
        %1309 = vmatpush.xpose.msra.mxu0 0.0
        %1310 = vmatpush.xpose.msra.mxu0 0.0
        %1311 = vmatpush.xpose.msra.mxu0 %v1295
        %1312 = vmatpush.xpose.msra.mxu0 %v1293
        %1313 = vmatmul.f32.gmra.mxu0 %v1289
        %v1314 = vpop.f32.mrf.mxu0
        %v1315 = vadd.f32 0.0, %v1314
        %1316 = vmatmul.f32.gmra.mxu0 %v1291
        %v1317 = vpop.f32.mrf.mxu0
        %v1318 = vadd.f32 0.0, %v1317
        %1319 = vdwg.mxu0
        %v1320 = vmul.f32 %v1315, 0.17677669
        %v1321 = vmul.f32 %v1318, 0.17677669
        %v1322 = vsel %vm852, %v1320, -inf
        %1323 = vmax.xlane.f32.xlu0 %v1322
        %v1324 = vpop.xlane.xlu0 %1323
        %v1325 = vsel %vm852, %v1321, -inf
        %1326 = vmax.xlane.f32.xlu0 %v1325
        %v1327 = vpop.xlane.xlu0 %1326
        %v1328 = vsub.f32 %v1320, %v1324
        %v1329 = vsub.f32 %v1321, %v1327
        %v1330 = vmul.f32 %v1328, 1.442695
        %v1331 = vpow.pop %v1330
        %v1332 = vmul.f32 %v1329, 1.442695
        %v1333 = vpow.pop %v1332
        %v1334 = vsel %vm852, %v1331, 0.0
        %1335 = vadd.xlane.f32.xlu0 %v1334
        %v1336 = vpop.xlane.xlu0 %1335
        %v1337 = vsel %vm852, %v1333, 0.0
        %1338 = vadd.xlane.f32.xlu0 %v1337
        %v1339 = vpop.xlane.xlu0 %1338
        %v1340 = vrcp.pop %v1336
        %v1341 = vmul.f32 %v1336, %v1340
        %v1342 = vsub.f32 1.0, %v1341
        %v1343 = vmul.f32 %v1340, %v1342
        %v1344 = vadd.f32 %v1340, %v1343
        %vm1345 = vweird.f32 %v1336
        %vm1346 = vweird.f32 %v1340
        %vm1347 = vmor %vm1345, %vm1346
        %v1348 = vsel %vm1347, %v1340, %v1344
        %v1349 = vand.u32 2147483647, %v1336
        %vm1350 = vcmp.eq.f32.partialorder %v1349, 8.507059e+37
        %v1351 = vand.u32 %v1336, 2147483648
        %v1352 = vor.u32 1.1754944e-38, %v1351
        %v1353 = vsel %vm1350, %v1352, %v1348
        %v1354 = vmul.f32 %v1331, %v1353
        %v1355 = vrcp.pop %v1339
        %v1356 = vmul.f32 %v1339, %v1355
        %v1357 = vsub.f32 1.0, %v1356
        %v1358 = vmul.f32 %v1355, %v1357
        %v1359 = vadd.f32 %v1355, %v1358
        %vm1360 = vweird.f32 %v1339
        %vm1361 = vweird.f32 %v1355
        %vm1362 = vmor %vm1360, %vm1361
        %v1363 = vsel %vm1362, %v1355, %v1359
        %v1364 = vand.u32 2147483647, %v1339
        %vm1365 = vcmp.eq.f32.partialorder %v1364, 8.507059e+37
        %v1366 = vand.u32 %v1339, 2147483648
        %v1367 = vor.u32 1.1754944e-38, %v1366
        %v1368 = vsel %vm1365, %v1367, %v1363
        %v1369 = vmul.f32 %v1333, %v1368
        %1370 = vrot.lane.b32.xlu0 %v809, 32
        %v1371 = vpop.permute.xlu0 %1370
        %1372 = vrot.lane.b32.xlu0 %v812, 32
        %v1373 = vpop.permute.xlu0 %1372
        %v1377 = vsel %vm852, %v1354, 0
        %v1380 = vsel %vm852, %v1369, 0
        %1382 = vmatpush.msra.mxu0 0.0
        %1383 = vmatpush.msra.mxu0 0.0
        %1384 = vmatpush.msra.mxu0 0.0
        %1385 = vmatpush.msra.mxu0 0.0
        %1386 = vmatpush.msra.mxu0 0.0
        %1387 = vmatpush.msra.mxu0 0.0
        %1388 = vmatpush.msra.mxu0 0.0
        %1389 = vmatpush.msra.mxu0 0.0
        %1390 = vmatpush.msra.mxu0 0.0
        %1391 = vmatpush.msra.mxu0 0.0
        %1392 = vmatpush.msra.mxu0 0.0
        %1393 = vmatpush.msra.mxu0 0.0
        %1394 = vmatpush.msra.mxu0 0.0
        %1395 = vmatpush.msra.mxu0 0.0
        %1396 = vmatpush.msra.mxu0 %v1373
        %1397 = vmatpush.msra.mxu0 %v1371
        %1398 = vmatmul.f32.gmra.mxu0 %v1377
        %v1399 = vpop.f32.mrf.mxu0
        %v1400 = vadd.f32 0.0, %v1399
        %1401 = vmatmul.f32.gmra.mxu0 %v1380
        %v1402 = vpop.f32.mrf.mxu0
        %v1403 = vadd.f32 0.0, %v1402
        %1404 = vdwg.mxu0
        %v1405 = vld [vmem:[#allocation11 + $0x60] sm:$0xff]
        %v1406 = vld [vmem:[#allocation11 + $0x68] sm:$0xff]
        %v1407 = vld [vmem:[#allocation11 + $0x70] sm:$0xff]
        %v1408 = vld [vmem:[#allocation11 + $0x78] sm:$0xff]
        %v1410 = vsel %vm814, %v1400, 0
        %v1413 = vsel %vm814, %v1403, 0
        %1415 = vmatpush.msra.mxu0 0.0
        %1416 = vmatpush.msra.mxu0 0.0
        %1417 = vmatpush.msra.mxu0 0.0
        %1418 = vmatpush.msra.mxu0 0.0
        %1419 = vmatpush.msra.mxu0 0.0
        %1420 = vmatpush.msra.mxu0 0.0
        %1421 = vmatpush.msra.mxu0 0.0
        %1422 = vmatpush.msra.mxu0 0.0
        %1423 = vmatpush.msra.mxu0 0.0
        %1424 = vmatpush.msra.mxu0 0.0
        %1425 = vmatpush.msra.mxu0 0.0
        %1426 = vmatpush.msra.mxu0 0.0
        %1427 = vmatpush.msra.mxu0 %v1408
        %1428 = vmatpush.msra.mxu0 %v1407
        %1429 = vmatpush.msra.mxu0 %v1406
        %1430 = vmatpush.msra.mxu0 %v1405
        %1431 = vmatmul.f32.gmra.mxu0 %v1410
        %v1432 = vpop.f32.mrf.mxu0
        %v1433 = vadd.f32 0.0, %v1432
        %1434 = vmatmul.f32.gmra.mxu0 %v1413
        %v1435 = vpop.f32.mrf.mxu0
        %v1436 = vadd.f32 0.0, %v1435
        %1437 = vdwg.mxu0
        %v1438 = vadd.f32 %v1279, %v1433
        %v1439 = vadd.f32 %v1280, %v1436
        %v1440 = vld [vmem:[%s8] sm:$0x1]
        %v1442 = vperm.slane %v1440, 0
        %v1444 = vadd.f32 %v1438, %v1442
        %v1445 = vadd.f32 %v1439, %v1442
        %v1446 = vadd.f32 %v683, %v1444
        %v1447 = vadd.f32 %v684, %v1445
        %v1448 = vld [vmem:[%s9] sm:$0x1]
        %v1449 = vld [vmem:[%s10] sm:$0x1]
        %1450 = vadd.xlane.f32.xlu0 %v1446
        %v1451 = vpop.xlane.xlu0 %1450
        %1452 = vadd.xlane.f32.xlu0 %v1447
        %v1453 = vpop.xlane.xlu0 %1452
        %v1454 = vrcp.pop 128.0
        %v1455 = vmul.f32 128.0, %v1454
        %v1456 = vsub.f32 1.0, %v1455
        %v1457 = vmul.f32 %v1454, %v1456
        %v1458 = vadd.f32 %v1454, %v1457
        %vm1459 = vweird.f32 %v1454
        %v1460 = vsel %vm1459, %v1454, %v1458
        %v1461 = vmul.f32 %v1451, %v1460
        %v1462 = vmul.f32 %v1453, %v1460
        %v1463 = vsub.f32 %v1446, %v1461
        %v1464 = vsub.f32 %v1447, %v1462
        %v1465 = vmul.f32 %v1463, %v1463
        %v1466 = vmul.f32 %v1464, %v1464
        %1467 = vadd.xlane.f32.xlu0 %v1465
        %v1468 = vpop.xlane.xlu0 %1467
        %1469 = vadd.xlane.f32.xlu0 %v1466
        %v1470 = vpop.xlane.xlu0 %1469
        %v1471 = vmul.f32 %v1468, %v1460
        %v1472 = vmul.f32 %v1470, %v1460
        %v1473 = vadd.f32 %v1471, 1e-05
        %v1474 = vadd.f32 %v1472, 1e-05
        %v1475 = vrsqrt.pop %v1473
        %v1476 = vmul.f32 %v1475, %v1473
        %v1477 = vmul.f32 %v1476, %v1475
        %v1478 = vmul.f32 0.5, %v1477
        %v1479 = vsub.f32 1.5, %v1478
        %v1480 = vmul.f32 %v1475, %v1479
        %vm1481 = vweird.f32 %v1473
        %vm1482 = vweird.f32 %v1475
        %vm1483 = vmor %vm1481, %vm1482
        %v1484 = vsel %vm1483, %v1475, %v1480
        %v1485 = vrsqrt.pop %v1474
        %v1486 = vmul.f32 %v1485, %v1474
        %v1487 = vmul.f32 %v1486, %v1485
        %v1488 = vmul.f32 0.5, %v1487
        %v1489 = vsub.f32 1.5, %v1488
        %v1490 = vmul.f32 %v1485, %v1489
        %vm1491 = vweird.f32 %v1474
        %vm1492 = vweird.f32 %v1485
        %vm1493 = vmor %vm1491, %vm1492
        %v1494 = vsel %vm1493, %v1485, %v1490
        %v1495 = vmul.f32 %v1463, %v1484
        %v1496 = vmul.f32 %v1464, %v1494
        %v1498 = vperm.slane %v1448, 0
        %v1500 = vmul.f32 %v1495, %v1498
        %v1501 = vmul.f32 %v1496, %v1498
        %v1503 = vperm.slane %v1449, 0
        %v1505 = vadd.f32 %v1500, %v1503
        %v1506 = vadd.f32 %v1501, %v1503
        %v1507 = vld [vmem:[#allocation13] sm:$0xff]
        %v1508 = vld [vmem:[#allocation13 + $0x8] sm:$0xff]
        %v1509 = vld [vmem:[#allocation13 + $0x10] sm:$0xff]
        %v1510 = vld [vmem:[#allocation13 + $0x18] sm:$0xff]
        %v1511 = vld [vmem:[#allocation13 + $0x20] sm:$0xff]
        %v1512 = vld [vmem:[#allocation13 + $0x28] sm:$0xff]
        %v1513 = vld [vmem:[#allocation13 + $0x30] sm:$0xff]
        %v1514 = vld [vmem:[#allocation13 + $0x38] sm:$0xff]
        %v1515 = vld [vmem:[#allocation13 + $0x40] sm:$0xff]
        %v1516 = vld [vmem:[#allocation13 + $0x48] sm:$0xff]
        %v1517 = vld [vmem:[#allocation13 + $0x50] sm:$0xff]
        %v1518 = vld [vmem:[#allocation13 + $0x58] sm:$0xff]
        %v1519 = vld [vmem:[#allocation13 + $0x60] sm:$0xff]
        %v1520 = vld [vmem:[#allocation13 + $0x68] sm:$0xff]
        %v1521 = vld [vmem:[#allocation13 + $0x70] sm:$0xff]
        %v1522 = vld [vmem:[#allocation13 + $0x78] sm:$0xff]
        %v1523 = vld [vmem:[#allocation13 + $0x80] sm:$0xff]
        %v1524 = vld [vmem:[#allocation13 + $0x88] sm:$0xff]
        %v1525 = vld [vmem:[#allocation13 + $0x90] sm:$0xff]
        %v1526 = vld [vmem:[#allocation13 + $0x98] sm:$0xff]
        %v1527 = vld [vmem:[#allocation13 + $0xa0] sm:$0xff]
        %v1528 = vld [vmem:[#allocation13 + $0xa8] sm:$0xff]
        %v1529 = vld [vmem:[#allocation13 + $0xb0] sm:$0xff]
        %v1530 = vld [vmem:[#allocation13 + $0xb8] sm:$0xff]
        %v1531 = vld [vmem:[#allocation13 + $0xc0] sm:$0xff]
        %v1532 = vld [vmem:[#allocation13 + $0xc8] sm:$0xff]
        %v1533 = vld [vmem:[#allocation13 + $0xd0] sm:$0xff]
        %v1534 = vld [vmem:[#allocation13 + $0xd8] sm:$0xff]
        %v1535 = vld [vmem:[#allocation13 + $0xe0] sm:$0xff]
        %v1536 = vld [vmem:[#allocation13 + $0xe8] sm:$0xff]
        %v1537 = vld [vmem:[#allocation13 + $0xf0] sm:$0xff]
        %v1538 = vld [vmem:[#allocation13 + $0xf8] sm:$0xff]
        %v1539 = vld [vmem:[%s12] sm:$0x3]
        %v1541 = vperm.slane %v1539, 0
        %v1542 = vperm.slane %v1539, 1
        %1545 = vmatpush.msra.mxu0 %v1537
        %1546 = vmatpush.msra.mxu0 %v1535
        %1547 = vmatpush.msra.mxu0 %v1533
        %1548 = vmatpush.msra.mxu0 %v1531
        %1549 = vmatpush.msra.mxu0 %v1529
        %1550 = vmatpush.msra.mxu0 %v1527
        %1551 = vmatpush.msra.mxu0 %v1525
        %1552 = vmatpush.msra.mxu0 %v1523
        %1553 = vmatpush.msra.mxu0 %v1521
        %1554 = vmatpush.msra.mxu0 %v1519
        %1555 = vmatpush.msra.mxu0 %v1517
        %1556 = vmatpush.msra.mxu0 %v1515
        %1557 = vmatpush.msra.mxu0 %v1513
        %1558 = vmatpush.msra.mxu0 %v1511
        %1559 = vmatpush.msra.mxu0 %v1509
        %1560 = vmatpush.msra.mxu0 %v1507
        %1561 = vmatmul.f32.gmra.mxu0 %v1505
        %v1562 = vpop.f32.mrf.mxu0
        %v1563 = vadd.f32 %v1541, %v1562
        %1564 = vmatmul.f32.gmra.mxu0 %v1506
        %v1565 = vpop.f32.mrf.mxu0
        %v1566 = vadd.f32 %v1541, %v1565
        %1567 = vdwg.mxu0
        %1568 = vmatpush.msra.mxu0 %v1538
        %1569 = vmatpush.msra.mxu0 %v1536
        %1570 = vmatpush.msra.mxu0 %v1534
        %1571 = vmatpush.msra.mxu0 %v1532
        %1572 = vmatpush.msra.mxu0 %v1530
        %1573 = vmatpush.msra.mxu0 %v1528
        %1574 = vmatpush.msra.mxu0 %v1526
        %1575 = vmatpush.msra.mxu0 %v1524
        %1576 = vmatpush.msra.mxu0 %v1522
        %1577 = vmatpush.msra.mxu0 %v1520
        %1578 = vmatpush.msra.mxu0 %v1518
        %1579 = vmatpush.msra.mxu0 %v1516
        %1580 = vmatpush.msra.mxu0 %v1514
        %1581 = vmatpush.msra.mxu0 %v1512
        %1582 = vmatpush.msra.mxu0 %v1510
        %1583 = vmatpush.msra.mxu0 %v1508
        %1584 = vmatmul.f32.gmra.mxu0 %v1505
        %v1585 = vpop.f32.mrf.mxu0
        %v1586 = vadd.f32 %v1542, %v1585
        %1587 = vmatmul.f32.gmra.mxu0 %v1506
        %v1588 = vpop.f32.mrf.mxu0
        %v1589 = vadd.f32 %v1542, %v1588
        %1590 = vdwg.mxu0
        %v1591 = vmax.f32 %v1563, 0.0
        %v1592 = vmax.f32 %v1586, 0.0
        %v1593 = vmax.f32 %v1566, 0.0
        %v1594 = vmax.f32 %v1589, 0.0
        %v1595 = vld [vmem:[#allocation14] sm:$0xff]
        %v1596 = vld [vmem:[#allocation14 + $0x8] sm:$0xff]
        %v1597 = vld [vmem:[#allocation14 + $0x10] sm:$0xff]
        %v1598 = vld [vmem:[#allocation14 + $0x18] sm:$0xff]
        %v1599 = vld [vmem:[#allocation14 + $0x20] sm:$0xff]
        %v1600 = vld [vmem:[#allocation14 + $0x28] sm:$0xff]
        %v1601 = vld [vmem:[#allocation14 + $0x30] sm:$0xff]
        %v1602 = vld [vmem:[#allocation14 + $0x38] sm:$0xff]
        %v1603 = vld [vmem:[#allocation14 + $0x40] sm:$0xff]
        %v1604 = vld [vmem:[#allocation14 + $0x48] sm:$0xff]
        %v1605 = vld [vmem:[#allocation14 + $0x50] sm:$0xff]
        %v1606 = vld [vmem:[#allocation14 + $0x58] sm:$0xff]
        %v1607 = vld [vmem:[#allocation14 + $0x60] sm:$0xff]
        %v1608 = vld [vmem:[#allocation14 + $0x68] sm:$0xff]
        %v1609 = vld [vmem:[#allocation14 + $0x70] sm:$0xff]
        %v1610 = vld [vmem:[#allocation14 + $0x78] sm:$0xff]
        %v1611 = vld [vmem:[#allocation14 + $0x80] sm:$0xff]
        %v1612 = vld [vmem:[#allocation14 + $0x88] sm:$0xff]
        %v1613 = vld [vmem:[#allocation14 + $0x90] sm:$0xff]
        %v1614 = vld [vmem:[#allocation14 + $0x98] sm:$0xff]
        %v1615 = vld [vmem:[#allocation14 + $0xa0] sm:$0xff]
        %v1616 = vld [vmem:[#allocation14 + $0xa8] sm:$0xff]
        %v1617 = vld [vmem:[#allocation14 + $0xb0] sm:$0xff]
        %v1618 = vld [vmem:[#allocation14 + $0xb8] sm:$0xff]
        %v1619 = vld [vmem:[#allocation14 + $0xc0] sm:$0xff]
        %v1620 = vld [vmem:[#allocation14 + $0xc8] sm:$0xff]
        %v1621 = vld [vmem:[#allocation14 + $0xd0] sm:$0xff]
        %v1622 = vld [vmem:[#allocation14 + $0xd8] sm:$0xff]
        %v1623 = vld [vmem:[#allocation14 + $0xe0] sm:$0xff]
        %v1624 = vld [vmem:[#allocation14 + $0xe8] sm:$0xff]
        %v1625 = vld [vmem:[#allocation14 + $0xf0] sm:$0xff]
        %v1626 = vld [vmem:[#allocation14 + $0xf8] sm:$0xff]
        %v1627 = vld [vmem:[%s14] sm:$0x1]
        %v1629 = vperm.slane %v1627, 0
        %1631 = vmatpush.msra.mxu0 %v1610
        %1632 = vmatpush.msra.mxu0 %v1609
        %1633 = vmatpush.msra.mxu0 %v1608
        %1634 = vmatpush.msra.mxu0 %v1607
        %1635 = vmatpush.msra.mxu0 %v1606
        %1636 = vmatpush.msra.mxu0 %v1605
        %1637 = vmatpush.msra.mxu0 %v1604
        %1638 = vmatpush.msra.mxu0 %v1603
        %1639 = vmatpush.msra.mxu0 %v1602
        %1640 = vmatpush.msra.mxu0 %v1601
        %1641 = vmatpush.msra.mxu0 %v1600
        %1642 = vmatpush.msra.mxu0 %v1599
        %1643 = vmatpush.msra.mxu0 %v1598
        %1644 = vmatpush.msra.mxu0 %v1597
        %1645 = vmatpush.msra.mxu0 %v1596
        %1646 = vmatpush.msra.mxu0 %v1595
        %1647 = vmatmul.f32.gmra.mxu0 %v1591
        %v1648 = vpop.f32.mrf.mxu0
        %v1649 = vadd.f32 %v1629, %v1648
        %1650 = vmatmul.f32.gmra.mxu0 %v1593
        %v1651 = vpop.f32.mrf.mxu0
        %v1652 = vadd.f32 %v1629, %v1651
        %1653 = vdwg.mxu0
        %1654 = vmatpush.msra.mxu0 %v1626
        %1655 = vmatpush.msra.mxu0 %v1625
        %1656 = vmatpush.msra.mxu0 %v1624
        %1657 = vmatpush.msra.mxu0 %v1623
        %1658 = vmatpush.msra.mxu0 %v1622
        %1659 = vmatpush.msra.mxu0 %v1621
        %1660 = vmatpush.msra.mxu0 %v1620
        %1661 = vmatpush.msra.mxu0 %v1619
        %1662 = vmatpush.msra.mxu0 %v1618
        %1663 = vmatpush.msra.mxu0 %v1617
        %1664 = vmatpush.msra.mxu0 %v1616
        %1665 = vmatpush.msra.mxu0 %v1615
        %1666 = vmatpush.msra.mxu0 %v1614
        %1667 = vmatpush.msra.mxu0 %v1613
        %1668 = vmatpush.msra.mxu0 %v1612
        %1669 = vmatpush.msra.mxu0 %v1611
        %1670 = vmatmul.f32.gmra.mxu0 %v1592
        %v1671 = vpop.f32.mrf.mxu0
        %v1672 = vadd.f32 %v1649, %v1671
        %1673 = vmatmul.f32.gmra.mxu0 %v1594
        %v1674 = vpop.f32.mrf.mxu0
        %v1675 = vadd.f32 %v1652, %v1674
        %1676 = vdwg.mxu0
        %v1677 = vadd.f32 %v1505, %v1672
        %v1678 = vadd.f32 %v1506, %v1675
        %v1679 = vld [vmem:[%s15] sm:$0x1]
        %v1680 = vld [vmem:[%s16] sm:$0x1]
        %1681 = vadd.xlane.f32.xlu0 %v1677
        %v1682 = vpop.xlane.xlu0 %1681
        %1683 = vadd.xlane.f32.xlu0 %v1678
        %v1684 = vpop.xlane.xlu0 %1683
        %v1685 = vmul.f32 %v1682, %v1460
        %v1686 = vmul.f32 %v1684, %v1460
        %v1687 = vsub.f32 %v1677, %v1685
        %v1688 = vsub.f32 %v1678, %v1686
        %v1689 = vmul.f32 %v1687, %v1687
        %v1690 = vmul.f32 %v1688, %v1688
        %1691 = vadd.xlane.f32.xlu0 %v1689
        %v1692 = vpop.xlane.xlu0 %1691
        %1693 = vadd.xlane.f32.xlu0 %v1690
        %v1694 = vpop.xlane.xlu0 %1693
        %v1695 = vmul.f32 %v1692, %v1460
        %v1696 = vmul.f32 %v1694, %v1460
        %v1697 = vadd.f32 %v1695, 1e-05
        %v1698 = vadd.f32 %v1696, 1e-05
        %v1699 = vrsqrt.pop %v1697
        %v1700 = vmul.f32 %v1699, %v1697
        %v1701 = vmul.f32 %v1700, %v1699
        %v1702 = vmul.f32 0.5, %v1701
        %v1703 = vsub.f32 1.5, %v1702
        %v1704 = vmul.f32 %v1699, %v1703
        %vm1705 = vweird.f32 %v1697
        %vm1706 = vweird.f32 %v1699
        %vm1707 = vmor %vm1705, %vm1706
        %v1708 = vsel %vm1707, %v1699, %v1704
        %v1709 = vrsqrt.pop %v1698
        %v1710 = vmul.f32 %v1709, %v1698
        %v1711 = vmul.f32 %v1710, %v1709
        %v1712 = vmul.f32 0.5, %v1711
        %v1713 = vsub.f32 1.5, %v1712
        %v1714 = vmul.f32 %v1709, %v1713
        %vm1715 = vweird.f32 %v1698
        %vm1716 = vweird.f32 %v1709
        %vm1717 = vmor %vm1715, %vm1716
        %v1718 = vsel %vm1717, %v1709, %v1714
        %v1719 = vmul.f32 %v1687, %v1708
        %v1720 = vmul.f32 %v1688, %v1718
        %v1722 = vperm.slane %v1679, 0
        %v1724 = vmul.f32 %v1719, %v1722
        %v1725 = vmul.f32 %v1720, %v1722
        %v1727 = vperm.slane %v1680, 0
        %v1729 = vadd.f32 %v1724, %v1727
        %v1730 = vadd.f32 %v1725, %v1727
        %1731 = vst [vmem:[%s682] sm:$0xff] %v1729
        %1732 = vst [vmem:[%s682 + $0x8] sm:$0xff] %v1730
        %s1733 = sand.u32 %s408, 1
        %s1734 = scalar_lea.sflag [#allocation4], %s1733
        %s1735 = sand.u32 %s408, 1
        %s1736 = smul.addr %s1735, 16
        %s1737 = scalar_lea.vmem [#allocation16], %s1736
        // Predicated region
        $region121: #{tpu_custom_call.1} parent=87 // pred_check
          %p1738 = pneg %p418
        $region122: #{tpu_custom_call.1} parent=87 // pred_check_branch
          %1740 = sbr.rel (%p1738) target = $region124
        $region123: #{tpu_custom_call.1} parent=87 // pred_region
          %1742 = vsyncadd %s1734, 0
          %s1743 = smul.addr %s38, 2
          %s1744 = smul.addr %s1743, 8
          %s1745 = scalar_lea.hbm %s17, %s1744
          %s1746 = sshll.u32 %s1737, 4
          %s1747 = int_to_ptr.vmem [resolvable:$true] %s1746
          %s1748 = sshll.u32 %s1745, 4
          %s1749 = int_to_ptr.hbm [resolvable:$true] %s1748
          %1754 = dma.vmem_to_hbm [thread:$0]  %s1747, 256, %s1749, %s1734, 128, 128, 8
        $region124: #{tpu_custom_call.1} parent=87 // pred_fallthru
          _
      $region88: #{tpu_custom_call.1} parent=5 // pred_fallthru
        _
      %p1755 = scmp.le.s32.totalorder 2, %s33
      // Predicated region
      $region125: #{tpu_custom_call.1} parent=5 // pred_check
        %p1756 = pneg %p1755
      $region126: #{tpu_custom_call.1} parent=5 // pred_check_branch
        %1758 = sbr.rel (%p1756) target = $region128
      $region127: #{tpu_custom_call.1} parent=5 // pred_region
        %s1759 = ssub.s32 %s33, 2
        // Predicated region
        $region129: #{tpu_custom_call.1} parent=127 // pred_check
          %p1760 = pneg %p424
        $region130: #{tpu_custom_call.1} parent=127 // pred_check_branch
          %1762 = sbr.rel (%p1760) target = $region132
        $region131: #{tpu_custom_call.1} parent=127 // pred_region
          %s1763 = sand.u32 %s409, 1
          %s1764 = scalar_lea.sflag [#allocation4], %s1763
          %s1765 = sand.u32 %s409, 1
          %s1766 = smul.addr %s1765, 16
          %s1767 = scalar_lea.vmem [#allocation16], %s1766
          %1769 = dma.done %s1764, 256
        $region132: #{tpu_custom_call.1} parent=127 // pred_fallthru
          _
      $region128: #{tpu_custom_call.1} parent=5 // pred_fallthru
        _
    $region6: #{tpu_custom_call.1} parent=1 // loop_footer
      %s37 = sadd.s32 1, %s33
    $region7: #{tpu_custom_call.1} parent=1 // loop_footer_branch
      %32 = sbr.rel target = $region3
    $region8: #{tpu_custom_call.1} parent=1 // loop_exit
      _
    %1770 = vsyncpa [#allocation3], 1
    %s1771 = scalar_lea.sflag [#allocation3], 1
    %1772 = vsyncpa %s1771, 1
    %1773 = vsyncpa [#allocation6], 1
    %1774 = vsyncpa [#allocation9], 1
    %1775 = vsyncpa [#allocation12], 1
    %1776 = vsyncpa [#allocation15], 1
    %1777 = vsyncpa [#allocation4], 1
    %s1778 = scalar_lea.sflag [#allocation4], 1
    %1779 = vsyncpa %s1778, 1

</llo_original>
